<compile_context>
chip_gen: v5e
topology: v5e:2x2
jax: 0.10.0
libtpu: 0.0.40
codegen_flags: <defaults>
</compile_context>

<pallas_src>
import functools

import jax
import jax.numpy as jnp
from jax import lax
from jax.experimental import pallas as pl
from jax.experimental.pallas import tpu as pltpu


def _cbam_kernel(x_ref, w1t_ref, w2_ref, wsa_ref, o_ref, vpad_ref, *, W, padl):
    # x_ref  : (nb, C, HW) VMEM      -- input block, lane-dense (HW on lanes)
    # w1t_ref: (C, R)      VMEM      -- conv1 (1x1) weight transposed: w1t[c,r] = W1[r,c]
    # w2_ref : (C, R)      VMEM      -- conv2 (1x1) weight, natural layout W2[c,r]
    # wsa_ref: (98,)       SMEM f32  -- 7x7 spatial conv weights, [in_ch*49 + ky*7 + kx]
    # o_ref  : (nb, C, HW) VMEM      -- output block
    # vpad_ref: (2, L) f32 VMEM      -- flat zero-padded spatial maps, interior at [padl, padl+HW)
    nb, C, HW = x_ref.shape

    # Zero the padded scratch every grid step.  Do NOT gate this on
    # pl.program_id(0)==0: with megacore sharding each core has its own
    # scratch and only one core runs step 0.  The interior is overwritten per
    # element below; the halos stay zero.
    vpad_ref[...] = jnp.zeros(vpad_ref.shape, vpad_ref.dtype)

    # Horizontal-validity masks (one per kx tap), hoisted out of all loops.
    lane = lax.broadcasted_iota(jnp.int32, (1, HW), 1)
    if W & (W - 1) == 0:
        xpos = jnp.bitwise_and(lane, W - 1)          # lane % W, power-of-two W
    else:
        xpos = lane % W
    xmask = [
        jnp.logical_and(xpos + dx >= 0, xpos + dx < W).astype(jnp.float32)
        for dx in range(-3, 4)
    ]

    w1t = w1t_ref[...].astype(jnp.float32)           # (C, R)
    w2 = w2_ref[...].astype(jnp.float32)             # (C, R)
    inv_c = 1.0 / float(C)

    def body(b, carry):
        xb = x_ref[b].astype(jnp.float32)            # (C, HW), f32 compute

        # ---------------- channel attention ----------------
        # Single flat reduction over H*W per stat (avg + max pooling).
        s = (jnp.mean(xb, axis=1, keepdims=True)
             + jnp.max(xb, axis=1, keepdims=True))   # (C, 1)

        # shared MLP on (avg + max): relu(W1 @ s) then sigmoid(W2 @ hidden)
        hidden = jnp.maximum(
            jnp.sum(w1t * s, axis=0, keepdims=True), 0.0)        # (1, R)
        ca = jax.nn.sigmoid(
            jnp.sum(w2 * hidden, axis=1, keepdims=True))         # (C, 1)

        # x1 stays live in f32 -- no store/load round trip through o_ref.
        x1 = xb * ca                                  # (C, HW)

        # ---------------- spatial attention ----------------
        avg_sp = jnp.mean(x1, axis=0, keepdims=True)  # (1, HW), lane-dense
        max_sp = jnp.max(x1, axis=0, keepdims=True)   # (1, HW)

        # Write interiors into the flat padded scratch (128-lane aligned).
        vpad_ref[0:1, padl:padl + HW] = avg_sp
        vpad_ref[1:2, padl:padl + HW] = max_sp

        # 7x7 conv (2 -> 1), padding 3, no bias.  Each tap is a contiguous
        # lane-offset read of the hot scratch; vertical OOB hits the zero
        # halo, horizontal row wrap is masked per kx.  Four independent
        # accumulators break the serial add chain.
        accs = [jnp.zeros((1, HW), jnp.float32) for _ in range(4)]
        k = 0
        for ky in range(7):
            row_off = padl + (ky - 3) * W
            for kx in range(7):
                off = row_off + (kx - 3)
                win = (vpad_ref[0:1, off:off + HW] * wsa_ref[k]
                       + vpad_ref[1:2, off:off + HW] * wsa_ref[49 + k])
                accs[k % 4] = accs[k % 4] + win * xmask[kx]
                k += 1
        sa = jax.nn.sigmoid((accs[0] + accs[1]) + (accs[2] + accs[3]))  # (1, HW)

        # Single lane-dense store per element.
        o_ref[b] = (x1 * sa).astype(o_ref.dtype)
        return carry

    lax.fori_loop(0, nb, body, 0, unroll=True)
    del inv_c  # (kept for clarity of the mean; jnp.mean already folds it)


def _pick_batch_block(n, slab_bytes, target_bytes=2 * 2**20, max_nb=8):
    """Largest divisor of n (<= max_nb) keeping the block under target_bytes
    while leaving at least 2 grid steps (so both v7x TensorCores get work)."""
    best = 1
    for cand in range(1, min(n, max_nb) + 1):
        if n % cand:
            continue
        if cand * slab_bytes > target_bytes:
            continue
        if (n // cand) < min(2, n):
            continue
        best = cand
    return best


def cbam_forward(x_nchw, w1, w2, wsa):
    """x_nchw: (N, C, H, W); w1: (R, C); w2: (C, R); wsa: (1, 2, 7, 7)."""
    N, C, H, W = x_nchw.shape
    R = w1.shape[0]
    HW = H * W

    # Free, contiguous reshapes: the kernel works on lane-dense (C, H*W).
    x_flat = x_nchw.reshape(N, C, HW)
    w1t = jnp.transpose(w1, (1, 0))                  # (C, R): tiny glue
    wsa_flat = wsa.reshape(-1).astype(jnp.float32)   # (98,): in_ch*49 + ky*7 + kx

    slab_bytes = C * HW * x_nchw.dtype.itemsize
    nb = _pick_batch_block(N, slab_bytes)
    grid = (N // nb,)

    # Flat padded scratch: halo must cover |dy*W + dx| <= 3*W + 3; round the
    # pad up to a 128-lane multiple so the interior store is aligned.
    padl = max(128, ((3 * W + 3 + 127) // 128) * 128)
    L = 2 * padl + HW
    scratch_bytes = 2 * L * 4

    block_bytes = nb * slab_bytes
    # in + out blocks double-buffered, plus f32 temps and headroom; capped
    # well below physical VMEM (v7x has 64 MiB per TensorCore).
    vmem_limit = int(min(40 * 2**20,
                         max(16 * 2**20,
                             4 * block_bytes + scratch_bytes
                             + 6 * C * HW * 4 + 2 * 2**20)))

    kernel = functools.partial(_cbam_kernel, W=W, padl=padl)

    out_flat = pl.pallas_call(
        kernel,
        out_shape=jax.ShapeDtypeStruct((N, C, HW), x_nchw.dtype),
        grid=grid,
        in_specs=[
            pl.BlockSpec((nb, C, HW), lambda n: (n, 0, 0)),
            pl.BlockSpec((C, R), lambda n: (0, 0)),
            pl.BlockSpec((C, R), lambda n: (0, 0)),
            pl.BlockSpec(memory_space=pltpu.MemorySpace.SMEM),
        ],
        out_specs=pl.BlockSpec((nb, C, HW), lambda n: (n, 0, 0)),
        scratch_shapes=[pltpu.VMEM((2, L), jnp.float32)],
        compiler_params=pltpu.CompilerParams(
            dimension_semantics=("parallel",),
            vmem_limit_bytes=vmem_limit),
    )(x_flat, w1t, w2, wsa_flat)

    return out_flat.reshape(N, C, H, W)


def cbam_reference(x, w1, w2, wsa):
    """Pure-JAX NCHW reference mirroring the PyTorch forward exactly."""
    avg = jnp.mean(x, axis=(2, 3), keepdims=True)
    mx = jnp.max(x, axis=(2, 3), keepdims=True)
    s = (avg + mx)[:, :, 0, 0]                               # (N, C)
    hidden = jnp.maximum(jnp.sum(s[:, None, :] * w1[None, :, :], axis=2), 0.0)
    ca = jax.nn.sigmoid(jnp.sum(hidden[:, None, :] * w2[None, :, :], axis=2))
    x1 = x * ca[:, :, None, None]
    avg_sp = jnp.mean(x1, axis=1, keepdims=True)
    max_sp = jnp.max(x1, axis=1, keepdims=True)
    cat = jnp.concatenate([avg_sp, max_sp], axis=1)          # (N, 2, H, W)
    sa_lin = jax.lax.conv_general_dilated(
        cat, wsa, window_strides=(1, 1), padding=((3, 3), (3, 3)),
        dimension_numbers=("NCHW", "OIHW", "NCHW"),
        precision=jax.lax.Precision.HIGHEST)
    sa = jax.nn.sigmoid(sa_lin)
    return x1 * sa


if __name__ == "__main__":
    N, C, H, W = 2, 4, 16, 16
    reduction = 16
    R = max(1, C // reduction)                               # = 1

    key = jax.random.PRNGKey(0)
    k1, k2, k3, k4 = jax.random.split(key, 4)
    x = jax.random.normal(k1, (N, C, H, W), jnp.float32)
    w1 = jax.random.normal(k2, (R, C), jnp.float32) * 0.5    # Conv2d(C, R, 1, bias=False)
    w2 = jax.random.normal(k3, (C, R), jnp.float32) * 0.5    # Conv2d(R, C, 1, bias=False)
    wsa = jax.random.normal(k4, (1, 2, 7, 7), jnp.float32) * 0.2  # Conv2d(2, 1, 7, pad=3)

    out = cbam_forward(x, w1, w2, wsa)
    out = jax.block_until_ready(out)

    ref = cbam_reference(x, w1, w2, wsa)
    assert out.shape == (N, C, H, W)
    if not jnp.allclose(out, ref, atol=1e-4, rtol=1e-4):
        raise AssertionError("Pallas CBAM output does not match reference")

    print("KERNEL_OK")
</pallas_src>

<mosaic_0001>
module attributes {stable_mosaic.version = 11 : i64} {
  func.func @_cbam_kernel(%arg0: i32, %arg1: memref<1x4x256xf32, #tpu.memory_space<vmem>>, %arg2: memref<4x1xf32, #tpu.memory_space<vmem>>, %arg3: memref<4x1xf32, #tpu.memory_space<vmem>>, %arg4: memref<98xf32, #tpu.memory_space<smem>>, %arg5: memref<1x4x256xf32, #tpu.memory_space<vmem>>, %arg6: memref<2x512xf32, #tpu.memory_space<vmem>>) attributes {dimension_semantics = [#tpu.dimension_semantics<parallel>], iteration_bounds = array<i64: 2>, scalar_prefetch = 0 : i64, scratch_operands = 1 : i64, tpu.core_type = #tpu.core_type<tc>, window_params = [{transform_indices = @transform_0, window_bounds = array<i64: 1, 4, 256>}, {pipeline_mode = #tpu.pipeline_mode<synchronous>, transform_indices = @transform_1, window_bounds = array<i64: 4, 1>}, {pipeline_mode = #tpu.pipeline_mode<synchronous>, transform_indices = @transform_2, window_bounds = array<i64: 4, 1>}, {transform_indices = @transform_3, window_bounds = array<i64: 98>}, {transform_indices = @transform_4, window_bounds = array<i64: 1, 4, 256>}]} {
    %cst = arith.constant 0.000000e+00 : f32
    %0 = vector.broadcast %cst : f32 to vector<2x512xf32>
    %c0 = arith.constant 0 : index
    %c0_0 = arith.constant 0 : index
    %1 = vector.load %arg6[%c0, %c0_0] : memref<2x512xf32, #tpu.memory_space<vmem>>, vector<2x512xf32>
    tpu.vector_store %arg6[%c0, %c0_0], %0 {strides = array<i32>} : memref<2x512xf32, #tpu.memory_space<vmem>>, vector<2x512xf32>,
    %2 = tpu.iota {dimensions = array<i32: 1>} : vector<1x256xi32>
    %c15_i32 = arith.constant 15 : i32
    %3 = vector.broadcast %c15_i32 : i32 to vector<1x256xi32>
    %4 = arith.andi %2, %3 : vector<1x256xi32>
    %c-3_i32 = arith.constant -3 : i32
    %5 = vector.broadcast %c-3_i32 : i32 to vector<1x256xi32>
    %6 = arith.addi %4, %5 : vector<1x256xi32>
    %c0_i32 = arith.constant 0 : i32
    %7 = vector.broadcast %c0_i32 : i32 to vector<1x256xi32>
    %8 = arith.cmpi sge, %6, %7 : vector<1x256xi32>
    %c-3_i32_1 = arith.constant -3 : i32
    %9 = vector.broadcast %c-3_i32_1 : i32 to vector<1x256xi32>
    %10 = arith.addi %4, %9 : vector<1x256xi32>
    %c16_i32 = arith.constant 16 : i32
    %11 = vector.broadcast %c16_i32 : i32 to vector<1x256xi32>
    %12 = arith.cmpi slt, %10, %11 : vector<1x256xi32>
    %13 = arith.andi %8, %12 : vector<1x256xi1>
    %14 = arith.extui %13 : vector<1x256xi1> to vector<1x256xi32>
    %15 = arith.sitofp %14 : vector<1x256xi32> to vector<1x256xf32>
    %c-2_i32 = arith.constant -2 : i32
    %16 = vector.broadcast %c-2_i32 : i32 to vector<1x256xi32>
    %17 = arith.addi %4, %16 : vector<1x256xi32>
    %c0_i32_2 = arith.constant 0 : i32
    %18 = vector.broadcast %c0_i32_2 : i32 to vector<1x256xi32>
    %19 = arith.cmpi sge, %17, %18 : vector<1x256xi32>
    %c-2_i32_3 = arith.constant -2 : i32
    %20 = vector.broadcast %c-2_i32_3 : i32 to vector<1x256xi32>
    %21 = arith.addi %4, %20 : vector<1x256xi32>
    %c16_i32_4 = arith.constant 16 : i32
    %22 = vector.broadcast %c16_i32_4 : i32 to vector<1x256xi32>
    %23 = arith.cmpi slt, %21, %22 : vector<1x256xi32>
    %24 = arith.andi %19, %23 : vector<1x256xi1>
    %25 = arith.extui %24 : vector<1x256xi1> to vector<1x256xi32>
    %26 = arith.sitofp %25 : vector<1x256xi32> to vector<1x256xf32>
    %c-1_i32 = arith.constant -1 : i32
    %27 = vector.broadcast %c-1_i32 : i32 to vector<1x256xi32>
    %28 = arith.addi %4, %27 : vector<1x256xi32>
    %c0_i32_5 = arith.constant 0 : i32
    %29 = vector.broadcast %c0_i32_5 : i32 to vector<1x256xi32>
    %30 = arith.cmpi sge, %28, %29 : vector<1x256xi32>
    %c-1_i32_6 = arith.constant -1 : i32
    %31 = vector.broadcast %c-1_i32_6 : i32 to vector<1x256xi32>
    %32 = arith.addi %4, %31 : vector<1x256xi32>
    %c16_i32_7 = arith.constant 16 : i32
    %33 = vector.broadcast %c16_i32_7 : i32 to vector<1x256xi32>
    %34 = arith.cmpi slt, %32, %33 : vector<1x256xi32>
    %35 = arith.andi %30, %34 : vector<1x256xi1>
    %36 = arith.extui %35 : vector<1x256xi1> to vector<1x256xi32>
    %37 = arith.sitofp %36 : vector<1x256xi32> to vector<1x256xf32>
    %c0_i32_8 = arith.constant 0 : i32
    %38 = vector.broadcast %c0_i32_8 : i32 to vector<1x256xi32>
    %39 = arith.addi %4, %38 : vector<1x256xi32>
    %c0_i32_9 = arith.constant 0 : i32
    %40 = vector.broadcast %c0_i32_9 : i32 to vector<1x256xi32>
    %41 = arith.cmpi sge, %39, %40 : vector<1x256xi32>
    %c0_i32_10 = arith.constant 0 : i32
    %42 = vector.broadcast %c0_i32_10 : i32 to vector<1x256xi32>
    %43 = arith.addi %4, %42 : vector<1x256xi32>
    %c16_i32_11 = arith.constant 16 : i32
    %44 = vector.broadcast %c16_i32_11 : i32 to vector<1x256xi32>
    %45 = arith.cmpi slt, %43, %44 : vector<1x256xi32>
    %46 = arith.andi %41, %45 : vector<1x256xi1>
    %47 = arith.extui %46 : vector<1x256xi1> to vector<1x256xi32>
    %48 = arith.sitofp %47 : vector<1x256xi32> to vector<1x256xf32>
    %c1_i32 = arith.constant 1 : i32
    %49 = vector.broadcast %c1_i32 : i32 to vector<1x256xi32>
    %50 = arith.addi %4, %49 : vector<1x256xi32>
    %c0_i32_12 = arith.constant 0 : i32
    %51 = vector.broadcast %c0_i32_12 : i32 to vector<1x256xi32>
    %52 = arith.cmpi sge, %50, %51 : vector<1x256xi32>
    %c1_i32_13 = arith.constant 1 : i32
    %53 = vector.broadcast %c1_i32_13 : i32 to vector<1x256xi32>
    %54 = arith.addi %4, %53 : vector<1x256xi32>
    %c16_i32_14 = arith.constant 16 : i32
    %55 = vector.broadcast %c16_i32_14 : i32 to vector<1x256xi32>
    %56 = arith.cmpi slt, %54, %55 : vector<1x256xi32>
    %57 = arith.andi %52, %56 : vector<1x256xi1>
    %58 = arith.extui %57 : vector<1x256xi1> to vector<1x256xi32>
    %59 = arith.sitofp %58 : vector<1x256xi32> to vector<1x256xf32>
    %c2_i32 = arith.constant 2 : i32
    %60 = vector.broadcast %c2_i32 : i32 to vector<1x256xi32>
    %61 = arith.addi %4, %60 : vector<1x256xi32>
    %c0_i32_15 = arith.constant 0 : i32
    %62 = vector.broadcast %c0_i32_15 : i32 to vector<1x256xi32>
    %63 = arith.cmpi sge, %61, %62 : vector<1x256xi32>
    %c2_i32_16 = arith.constant 2 : i32
    %64 = vector.broadcast %c2_i32_16 : i32 to vector<1x256xi32>
    %65 = arith.addi %4, %64 : vector<1x256xi32>
    %c16_i32_17 = arith.constant 16 : i32
    %66 = vector.broadcast %c16_i32_17 : i32 to vector<1x256xi32>
    %67 = arith.cmpi slt, %65, %66 : vector<1x256xi32>
    %68 = arith.andi %63, %67 : vector<1x256xi1>
    %69 = arith.extui %68 : vector<1x256xi1> to vector<1x256xi32>
    %70 = arith.sitofp %69 : vector<1x256xi32> to vector<1x256xf32>
    %c3_i32 = arith.constant 3 : i32
    %71 = vector.broadcast %c3_i32 : i32 to vector<1x256xi32>
    %72 = arith.addi %4, %71 : vector<1x256xi32>
    %c0_i32_18 = arith.constant 0 : i32
    %73 = vector.broadcast %c0_i32_18 : i32 to vector<1x256xi32>
    %74 = arith.cmpi sge, %72, %73 : vector<1x256xi32>
    %c3_i32_19 = arith.constant 3 : i32
    %75 = vector.broadcast %c3_i32_19 : i32 to vector<1x256xi32>
    %76 = arith.addi %4, %75 : vector<1x256xi32>
    %c16_i32_20 = arith.constant 16 : i32
    %77 = vector.broadcast %c16_i32_20 : i32 to vector<1x256xi32>
    %78 = arith.cmpi slt, %76, %77 : vector<1x256xi32>
    %79 = arith.andi %74, %78 : vector<1x256xi1>
    %80 = arith.extui %79 : vector<1x256xi1> to vector<1x256xi32>
    %81 = arith.sitofp %80 : vector<1x256xi32> to vector<1x256xf32>
    %c0_21 = arith.constant 0 : index
    %c0_22 = arith.constant 0 : index
    %82 = vector.load %arg2[%c0_21, %c0_22] : memref<4x1xf32, #tpu.memory_space<vmem>>, vector<4x1xf32>
    %c0_23 = arith.constant 0 : index
    %c0_24 = arith.constant 0 : index
    %83 = vector.load %arg3[%c0_23, %c0_24] : memref<4x1xf32, #tpu.memory_space<vmem>>, vector<4x1xf32>
    %c0_i32_25 = arith.constant 0 : i32
    %84 = arith.index_cast %c0_i32_25 : i32 to index
    %c0_26 = arith.constant 0 : index
    %c0_27 = arith.constant 0 : index
    %85 = vector.load %arg1[%84, %c0_26, %c0_27] : memref<1x4x256xf32, #tpu.memory_space<vmem>>, vector<1x4x256xf32>
    %86 = vector.shape_cast %85 : vector<1x4x256xf32> to vector<4x256xf32>
    %cst_28 = arith.constant dense<0.000000e+00> : vector<4xf32>
    %87 = vector.multi_reduction <add>, %86, %cst_28 [1] : vector<4x256xf32> to vector<4xf32>
    %88 = vector.shape_cast %87 : vector<4xf32> to vector<4x1xf32>
    %cst_29 = arith.constant 2.560000e+02 : f32
    %89 = vector.broadcast %cst_29 : f32 to vector<4x1xf32>
    %90 = arith.divf %88, %89 : vector<4x1xf32>
    %cst_30 = arith.constant dense<0xFF800000> : vector<4xf32>
    %91 = vector.multi_reduction <maximumf>, %86, %cst_30 [1] : vector<4x256xf32> to vector<4xf32>
    %92 = vector.shape_cast %91 : vector<4xf32> to vector<4x1xf32>
    %93 = arith.addf %90, %92 : vector<4x1xf32>
    %94 = arith.mulf %82, %93 : vector<4x1xf32>
    %cst_31 = arith.constant dense<0.000000e+00> : vector<1xf32>
    %95 = vector.multi_reduction <add>, %94, %cst_31 [0] : vector<4x1xf32> to vector<1xf32>
    %96 = vector.shape_cast %95 : vector<1xf32> to vector<1x1xf32>
    %cst_32 = arith.constant 0.000000e+00 : f32
    %97 = vector.broadcast %cst_32 : f32 to vector<1x1xf32>
    %98 = arith.maximumf %96, %97 : vector<1x1xf32>
    %99 = vector.broadcast %98 : vector<1x1xf32> to vector<4x1xf32>
    %100 = arith.mulf %83, %99 : vector<4x1xf32>
    %cst_33 = arith.constant dense<0.000000e+00> : vector<4xf32>
    %101 = vector.multi_reduction <add>, %100, %cst_33 [1] : vector<4x1xf32> to vector<4xf32>
    %102 = vector.shape_cast %101 : vector<4xf32> to vector<4x1xf32>
    %103 = arith.negf %102 : vector<4x1xf32>
    %104 = math.exp %103 : vector<4x1xf32>
    %cst_34 = arith.constant 1.000000e+00 : f32
    %105 = vector.broadcast %cst_34 : f32 to vector<4x1xf32>
    %106 = arith.addf %105, %104 : vector<4x1xf32>
    %107 = arith.divf %105, %106 : vector<4x1xf32>
    %108 = vector.broadcast %107 : vector<4x1xf32> to vector<4x256xf32>
    %109 = arith.mulf %86, %108 : vector<4x256xf32>
    %cst_35 = arith.constant dense<0.000000e+00> : vector<256xf32>
    %110 = vector.multi_reduction <add>, %109, %cst_35 [0] : vector<4x256xf32> to vector<256xf32>
    %111 = vector.shape_cast %110 : vector<256xf32> to vector<1x256xf32>
    %cst_36 = arith.constant 4.000000e+00 : f32
    %112 = vector.broadcast %cst_36 : f32 to vector<1x256xf32>
    %113 = arith.divf %111, %112 : vector<1x256xf32>
    %cst_37 = arith.constant dense<0xFF800000> : vector<256xf32>
    %114 = vector.multi_reduction <maximumf>, %109, %cst_37 [0] : vector<4x256xf32> to vector<256xf32>
    %115 = vector.shape_cast %114 : vector<256xf32> to vector<1x256xf32>
    %c0_38 = arith.constant 0 : index
    %c128 = arith.constant 128 : index
    %116 = vector.load %arg6[%c0_38, %c128] : memref<2x512xf32, #tpu.memory_space<vmem>>, vector<1x256xf32>
    tpu.vector_store %arg6[%c0_38, %c128], %113 {strides = array<i32>} : memref<2x512xf32, #tpu.memory_space<vmem>>, vector<1x256xf32>,
    %c1 = arith.constant 1 : index
    %c128_39 = arith.constant 128 : index
    %117 = vector.load %arg6[%c1, %c128_39] : memref<2x512xf32, #tpu.memory_space<vmem>>, vector<1x256xf32>
    tpu.vector_store %arg6[%c1, %c128_39], %115 {strides = array<i32>} : memref<2x512xf32, #tpu.memory_space<vmem>>, vector<1x256xf32>,
    %cst_40 = arith.constant 0.000000e+00 : f32
    %118 = vector.broadcast %cst_40 : f32 to vector<1x256xf32>
    %cst_41 = arith.constant 0.000000e+00 : f32
    %119 = vector.broadcast %cst_41 : f32 to vector<1x256xf32>
    %cst_42 = arith.constant 0.000000e+00 : f32
    %120 = vector.broadcast %cst_42 : f32 to vector<1x256xf32>
    %cst_43 = arith.constant 0.000000e+00 : f32
    %121 = vector.broadcast %cst_43 : f32 to vector<1x256xf32>
    %c0_44 = arith.constant 0 : index
    %c77 = arith.constant 77 : index
    %122 = vector.load %arg6[%c0_44, %c77] : memref<2x512xf32, #tpu.memory_space<vmem>>, vector<1x256xf32>
    %c0_45 = arith.constant 0 : index
    %123 = memref.load %arg4[%c0_45] : memref<98xf32, #tpu.memory_space<smem>>
    %124 = vector.broadcast %123 : f32 to vector<1x256xf32>
    %125 = arith.mulf %122, %124 : vector<1x256xf32>
    %c1_46 = arith.constant 1 : index
    %c77_47 = arith.constant 77 : index
    %126 = vector.load %arg6[%c1_46, %c77_47] : memref<2x512xf32, #tpu.memory_space<vmem>>, vector<1x256xf32>
    %c49 = arith.constant 49 : index
    %127 = memref.load %arg4[%c49] : memref<98xf32, #tpu.memory_space<smem>>
    %128 = vector.broadcast %127 : f32 to vector<1x256xf32>
    %129 = arith.mulf %126, %128 : vector<1x256xf32>
    %130 = arith.addf %125, %129 : vector<1x256xf32>
    %131 = arith.mulf %130, %15 : vector<1x256xf32>
    %132 = arith.addf %118, %131 : vector<1x256xf32>
    %c0_48 = arith.constant 0 : index
    %c78 = arith.constant 78 : index
    %133 = vector.load %arg6[%c0_48, %c78] : memref<2x512xf32, #tpu.memory_space<vmem>>, vector<1x256xf32>
    %c1_49 = arith.constant 1 : index
    %134 = memref.load %arg4[%c1_49] : memref<98xf32, #tpu.memory_space<smem>>
    %135 = vector.broadcast %134 : f32 to vector<1x256xf32>
    %136 = arith.mulf %133, %135 : vector<1x256xf32>
    %c1_50 = arith.constant 1 : index
    %c78_51 = arith.constant 78 : index
    %137 = vector.load %arg6[%c1_50, %c78_51] : memref<2x512xf32, #tpu.memory_space<vmem>>, vector<1x256xf32>
    %c50 = arith.constant 50 : index
    %138 = memref.load %arg4[%c50] : memref<98xf32, #tpu.memory_space<smem>>
    %139 = vector.broadcast %138 : f32 to vector<1x256xf32>
    %140 = arith.mulf %137, %139 : vector<1x256xf32>
    %141 = arith.addf %136, %140 : vector<1x256xf32>
    %142 = arith.mulf %141, %26 : vector<1x256xf32>
    %143 = arith.addf %119, %142 : vector<1x256xf32>
    %c0_52 = arith.constant 0 : index
    %c79 = arith.constant 79 : index
    %144 = vector.load %arg6[%c0_52, %c79] : memref<2x512xf32, #tpu.memory_space<vmem>>, vector<1x256xf32>
    %c2 = arith.constant 2 : index
    %145 = memref.load %arg4[%c2] : memref<98xf32, #tpu.memory_space<smem>>
    %146 = vector.broadcast %145 : f32 to vector<1x256xf32>
    %147 = arith.mulf %144, %146 : vector<1x256xf32>
    %c1_53 = arith.constant 1 : index
    %c79_54 = arith.constant 79 : index
    %148 = vector.load %arg6[%c1_53, %c79_54] : memref<2x512xf32, #tpu.memory_space<vmem>>, vector<1x256xf32>
    %c51 = arith.constant 51 : index
    %149 = memref.load %arg4[%c51] : memref<98xf32, #tpu.memory_space<smem>>
    %150 = vector.broadcast %149 : f32 to vector<1x256xf32>
    %151 = arith.mulf %148, %150 : vector<1x256xf32>
    %152 = arith.addf %147, %151 : vector<1x256xf32>
    %153 = arith.mulf %152, %37 : vector<1x256xf32>
    %154 = arith.addf %120, %153 : vector<1x256xf32>
    %c0_55 = arith.constant 0 : index
    %c80 = arith.constant 80 : index
    %155 = vector.load %arg6[%c0_55, %c80] : memref<2x512xf32, #tpu.memory_space<vmem>>, vector<1x256xf32>
    %c3 = arith.constant 3 : index
    %156 = memref.load %arg4[%c3] : memref<98xf32, #tpu.memory_space<smem>>
    %157 = vector.broadcast %156 : f32 to vector<1x256xf32>
    %158 = arith.mulf %155, %157 : vector<1x256xf32>
    %c1_56 = arith.constant 1 : index
    %c80_57 = arith.constant 80 : index
    %159 = vector.load %arg6[%c1_56, %c80_57] : memref<2x512xf32, #tpu.memory_space<vmem>>, vector<1x256xf32>
    %c52 = arith.constant 52 : index
    %160 = memref.load %arg4[%c52] : memref<98xf32, #tpu.memory_space<smem>>
    %161 = vector.broadcast %160 : f32 to vector<1x256xf32>
    %162 = arith.mulf %159, %161 : vector<1x256xf32>
    %163 = arith.addf %158, %162 : vector<1x256xf32>
    %164 = arith.mulf %163, %48 : vector<1x256xf32>
    %165 = arith.addf %121, %164 : vector<1x256xf32>
    %c0_58 = arith.constant 0 : index
    %c81 = arith.constant 81 : index
    %166 = vector.load %arg6[%c0_58, %c81] : memref<2x512xf32, #tpu.memory_space<vmem>>, vector<1x256xf32>
    %c4 = arith.constant 4 : index
    %167 = memref.load %arg4[%c4] : memref<98xf32, #tpu.memory_space<smem>>
    %168 = vector.broadcast %167 : f32 to vector<1x256xf32>
    %169 = arith.mulf %166, %168 : vector<1x256xf32>
    %c1_59 = arith.constant 1 : index
    %c81_60 = arith.constant 81 : index
    %170 = vector.load %arg6[%c1_59, %c81_60] : memref<2x512xf32, #tpu.memory_space<vmem>>, vector<1x256xf32>
    %c53 = arith.constant 53 : index
    %171 = memref.load %arg4[%c53] : memref<98xf32, #tpu.memory_space<smem>>
    %172 = vector.broadcast %171 : f32 to vector<1x256xf32>
    %173 = arith.mulf %170, %172 : vector<1x256xf32>
    %174 = arith.addf %169, %173 : vector<1x256xf32>
    %175 = arith.mulf %174, %59 : vector<1x256xf32>
    %176 = arith.addf %132, %175 : vector<1x256xf32>
    %c0_61 = arith.constant 0 : index
    %c82 = arith.constant 82 : index
    %177 = vector.load %arg6[%c0_61, %c82] : memref<2x512xf32, #tpu.memory_space<vmem>>, vector<1x256xf32>
    %c5 = arith.constant 5 : index
    %178 = memref.load %arg4[%c5] : memref<98xf32, #tpu.memory_space<smem>>
    %179 = vector.broadcast %178 : f32 to vector<1x256xf32>
    %180 = arith.mulf %177, %179 : vector<1x256xf32>
    %c1_62 = arith.constant 1 : index
    %c82_63 = arith.constant 82 : index
    %181 = vector.load %arg6[%c1_62, %c82_63] : memref<2x512xf32, #tpu.memory_space<vmem>>, vector<1x256xf32>
    %c54 = arith.constant 54 : index
    %182 = memref.load %arg4[%c54] : memref<98xf32, #tpu.memory_space<smem>>
    %183 = vector.broadcast %182 : f32 to vector<1x256xf32>
    %184 = arith.mulf %181, %183 : vector<1x256xf32>
    %185 = arith.addf %180, %184 : vector<1x256xf32>
    %186 = arith.mulf %185, %70 : vector<1x256xf32>
    %187 = arith.addf %143, %186 : vector<1x256xf32>
    %c0_64 = arith.constant 0 : index
    %c83 = arith.constant 83 : index
    %188 = vector.load %arg6[%c0_64, %c83] : memref<2x512xf32, #tpu.memory_space<vmem>>, vector<1x256xf32>
    %c6 = arith.constant 6 : index
    %189 = memref.load %arg4[%c6] : memref<98xf32, #tpu.memory_space<smem>>
    %190 = vector.broadcast %189 : f32 to vector<1x256xf32>
    %191 = arith.mulf %188, %190 : vector<1x256xf32>
    %c1_65 = arith.constant 1 : index
    %c83_66 = arith.constant 83 : index
    %192 = vector.load %arg6[%c1_65, %c83_66] : memref<2x512xf32, #tpu.memory_space<vmem>>, vector<1x256xf32>
    %c55 = arith.constant 55 : index
    %193 = memref.load %arg4[%c55] : memref<98xf32, #tpu.memory_space<smem>>
    %194 = vector.broadcast %193 : f32 to vector<1x256xf32>
    %195 = arith.mulf %192, %194 : vector<1x256xf32>
    %196 = arith.addf %191, %195 : vector<1x256xf32>
    %197 = arith.mulf %196, %81 : vector<1x256xf32>
    %198 = arith.addf %154, %197 : vector<1x256xf32>
    %c0_67 = arith.constant 0 : index
    %c93 = arith.constant 93 : index
    %199 = vector.load %arg6[%c0_67, %c93] : memref<2x512xf32, #tpu.memory_space<vmem>>, vector<1x256xf32>
    %c7 = arith.constant 7 : index
    %200 = memref.load %arg4[%c7] : memref<98xf32, #tpu.memory_space<smem>>
    %201 = vector.broadcast %200 : f32 to vector<1x256xf32>
    %202 = arith.mulf %199, %201 : vector<1x256xf32>
    %c1_68 = arith.constant 1 : index
    %c93_69 = arith.constant 93 : index
    %203 = vector.load %arg6[%c1_68, %c93_69] : memref<2x512xf32, #tpu.memory_space<vmem>>, vector<1x256xf32>
    %c56 = arith.constant 56 : index
    %204 = memref.load %arg4[%c56] : memref<98xf32, #tpu.memory_space<smem>>
    %205 = vector.broadcast %204 : f32 to vector<1x256xf32>
    %206 = arith.mulf %203, %205 : vector<1x256xf32>
    %207 = arith.addf %202, %206 : vector<1x256xf32>
    %208 = arith.mulf %207, %15 : vector<1x256xf32>
    %209 = arith.addf %165, %208 : vector<1x256xf32>
    %c0_70 = arith.constant 0 : index
    %c94 = arith.constant 94 : index
    %210 = vector.load %arg6[%c0_70, %c94] : memref<2x512xf32, #tpu.memory_space<vmem>>, vector<1x256xf32>
    %c8 = arith.constant 8 : index
    %211 = memref.load %arg4[%c8] : memref<98xf32, #tpu.memory_space<smem>>
    %212 = vector.broadcast %211 : f32 to vector<1x256xf32>
    %213 = arith.mulf %210, %212 : vector<1x256xf32>
    %c1_71 = arith.constant 1 : index
    %c94_72 = arith.constant 94 : index
    %214 = vector.load %arg6[%c1_71, %c94_72] : memref<2x512xf32, #tpu.memory_space<vmem>>, vector<1x256xf32>
    %c57 = arith.constant 57 : index
    %215 = memref.load %arg4[%c57] : memref<98xf32, #tpu.memory_space<smem>>
    %216 = vector.broadcast %215 : f32 to vector<1x256xf32>
    %217 = arith.mulf %214, %216 : vector<1x256xf32>
    %218 = arith.addf %213, %217 : vector<1x256xf32>
    %219 = arith.mulf %218, %26 : vector<1x256xf32>
    %220 = arith.addf %176, %219 : vector<1x256xf32>
    %c0_73 = arith.constant 0 : index
    %c95 = arith.constant 95 : index
    %221 = vector.load %arg6[%c0_73, %c95] : memref<2x512xf32, #tpu.memory_space<vmem>>, vector<1x256xf32>
    %c9 = arith.constant 9 : index
    %222 = memref.load %arg4[%c9] : memref<98xf32, #tpu.memory_space<smem>>
    %223 = vector.broadcast %222 : f32 to vector<1x256xf32>
    %224 = arith.mulf %221, %223 : vector<1x256xf32>
    %c1_74 = arith.constant 1 : index
    %c95_75 = arith.constant 95 : index
    %225 = vector.load %arg6[%c1_74, %c95_75] : memref<2x512xf32, #tpu.memory_space<vmem>>, vector<1x256xf32>
    %c58 = arith.constant 58 : index
    %226 = memref.load %arg4[%c58] : memref<98xf32, #tpu.memory_space<smem>>
    %227 = vector.broadcast %226 : f32 to vector<1x256xf32>
    %228 = arith.mulf %225, %227 : vector<1x256xf32>
    %229 = arith.addf %224, %228 : vector<1x256xf32>
    %230 = arith.mulf %229, %37 : vector<1x256xf32>
    %231 = arith.addf %187, %230 : vector<1x256xf32>
    %c0_76 = arith.constant 0 : index
    %c96 = arith.constant 96 : index
    %232 = vector.load %arg6[%c0_76, %c96] : memref<2x512xf32, #tpu.memory_space<vmem>>, vector<1x256xf32>
    %c10 = arith.constant 10 : index
    %233 = memref.load %arg4[%c10] : memref<98xf32, #tpu.memory_space<smem>>
    %234 = vector.broadcast %233 : f32 to vector<1x256xf32>
    %235 = arith.mulf %232, %234 : vector<1x256xf32>
    %c1_77 = arith.constant 1 : index
    %c96_78 = arith.constant 96 : index
    %236 = vector.load %arg6[%c1_77, %c96_78] : memref<2x512xf32, #tpu.memory_space<vmem>>, vector<1x256xf32>
    %c59 = arith.constant 59 : index
    %237 = memref.load %arg4[%c59] : memref<98xf32, #tpu.memory_space<smem>>
    %238 = vector.broadcast %237 : f32 to vector<1x256xf32>
    %239 = arith.mulf %236, %238 : vector<1x256xf32>
    %240 = arith.addf %235, %239 : vector<1x256xf32>
    %241 = arith.mulf %240, %48 : vector<1x256xf32>
    %242 = arith.addf %198, %241 : vector<1x256xf32>
    %c0_79 = arith.constant 0 : index
    %c97 = arith.constant 97 : index
    %243 = vector.load %arg6[%c0_79, %c97] : memref<2x512xf32, #tpu.memory_space<vmem>>, vector<1x256xf32>
    %c11 = arith.constant 11 : index
    %244 = memref.load %arg4[%c11] : memref<98xf32, #tpu.memory_space<smem>>
    %245 = vector.broadcast %244 : f32 to vector<1x256xf32>
    %246 = arith.mulf %243, %245 : vector<1x256xf32>
    %c1_80 = arith.constant 1 : index
    %c97_81 = arith.constant 97 : index
    %247 = vector.load %arg6[%c1_80, %c97_81] : memref<2x512xf32, #tpu.memory_space<vmem>>, vector<1x256xf32>
    %c60 = arith.constant 60 : index
    %248 = memref.load %arg4[%c60] : memref<98xf32, #tpu.memory_space<smem>>
    %249 = vector.broadcast %248 : f32 to vector<1x256xf32>
    %250 = arith.mulf %247, %249 : vector<1x256xf32>
    %251 = arith.addf %246, %250 : vector<1x256xf32>
    %252 = arith.mulf %251, %59 : vector<1x256xf32>
    %253 = arith.addf %209, %252 : vector<1x256xf32>
    %c0_82 = arith.constant 0 : index
    %c98 = arith.constant 98 : index
    %254 = vector.load %arg6[%c0_82, %c98] : memref<2x512xf32, #tpu.memory_space<vmem>>, vector<1x256xf32>
    %c12 = arith.constant 12 : index
    %255 = memref.load %arg4[%c12] : memref<98xf32, #tpu.memory_space<smem>>
    %256 = vector.broadcast %255 : f32 to vector<1x256xf32>
    %257 = arith.mulf %254, %256 : vector<1x256xf32>
    %c1_83 = arith.constant 1 : index
    %c98_84 = arith.constant 98 : index
    %258 = vector.load %arg6[%c1_83, %c98_84] : memref<2x512xf32, #tpu.memory_space<vmem>>, vector<1x256xf32>
    %c61 = arith.constant 61 : index
    %259 = memref.load %arg4[%c61] : memref<98xf32, #tpu.memory_space<smem>>
    %260 = vector.broadcast %259 : f32 to vector<1x256xf32>
    %261 = arith.mulf %258, %260 : vector<1x256xf32>
    %262 = arith.addf %257, %261 : vector<1x256xf32>
    %263 = arith.mulf %262, %70 : vector<1x256xf32>
    %264 = arith.addf %220, %263 : vector<1x256xf32>
    %c0_85 = arith.constant 0 : index
    %c99 = arith.constant 99 : index
    %265 = vector.load %arg6[%c0_85, %c99] : memref<2x512xf32, #tpu.memory_space<vmem>>, vector<1x256xf32>
    %c13 = arith.constant 13 : index
    %266 = memref.load %arg4[%c13] : memref<98xf32, #tpu.memory_space<smem>>
    %267 = vector.broadcast %266 : f32 to vector<1x256xf32>
    %268 = arith.mulf %265, %267 : vector<1x256xf32>
    %c1_86 = arith.constant 1 : index
    %c99_87 = arith.constant 99 : index
    %269 = vector.load %arg6[%c1_86, %c99_87] : memref<2x512xf32, #tpu.memory_space<vmem>>, vector<1x256xf32>
    %c62 = arith.constant 62 : index
    %270 = memref.load %arg4[%c62] : memref<98xf32, #tpu.memory_space<smem>>
    %271 = vector.broadcast %270 : f32 to vector<1x256xf32>
    %272 = arith.mulf %269, %271 : vector<1x256xf32>
    %273 = arith.addf %268, %272 : vector<1x256xf32>
    %274 = arith.mulf %273, %81 : vector<1x256xf32>
    %275 = arith.addf %231, %274 : vector<1x256xf32>
    %c0_88 = arith.constant 0 : index
    %c109 = arith.constant 109 : index
    %276 = vector.load %arg6[%c0_88, %c109] : memref<2x512xf32, #tpu.memory_space<vmem>>, vector<1x256xf32>
    %c14 = arith.constant 14 : index
    %277 = memref.load %arg4[%c14] : memref<98xf32, #tpu.memory_space<smem>>
    %278 = vector.broadcast %277 : f32 to vector<1x256xf32>
    %279 = arith.mulf %276, %278 : vector<1x256xf32>
    %c1_89 = arith.constant 1 : index
    %c109_90 = arith.constant 109 : index
    %280 = vector.load %arg6[%c1_89, %c109_90] : memref<2x512xf32, #tpu.memory_space<vmem>>, vector<1x256xf32>
    %c63 = arith.constant 63 : index
    %281 = memref.load %arg4[%c63] : memref<98xf32, #tpu.memory_space<smem>>
    %282 = vector.broadcast %281 : f32 to vector<1x256xf32>
    %283 = arith.mulf %280, %282 : vector<1x256xf32>
    %284 = arith.addf %279, %283 : vector<1x256xf32>
    %285 = arith.mulf %284, %15 : vector<1x256xf32>
    %286 = arith.addf %242, %285 : vector<1x256xf32>
    %c0_91 = arith.constant 0 : index
    %c110 = arith.constant 110 : index
    %287 = vector.load %arg6[%c0_91, %c110] : memref<2x512xf32, #tpu.memory_space<vmem>>, vector<1x256xf32>
    %c15 = arith.constant 15 : index
    %288 = memref.load %arg4[%c15] : memref<98xf32, #tpu.memory_space<smem>>
    %289 = vector.broadcast %288 : f32 to vector<1x256xf32>
    %290 = arith.mulf %287, %289 : vector<1x256xf32>
    %c1_92 = arith.constant 1 : index
    %c110_93 = arith.constant 110 : index
    %291 = vector.load %arg6[%c1_92, %c110_93] : memref<2x512xf32, #tpu.memory_space<vmem>>, vector<1x256xf32>
    %c64 = arith.constant 64 : index
    %292 = memref.load %arg4[%c64] : memref<98xf32, #tpu.memory_space<smem>>
    %293 = vector.broadcast %292 : f32 to vector<1x256xf32>
    %294 = arith.mulf %291, %293 : vector<1x256xf32>
    %295 = arith.addf %290, %294 : vector<1x256xf32>
    %296 = arith.mulf %295, %26 : vector<1x256xf32>
    %297 = arith.addf %253, %296 : vector<1x256xf32>
    %c0_94 = arith.constant 0 : index
    %c111 = arith.constant 111 : index
    %298 = vector.load %arg6[%c0_94, %c111] : memref<2x512xf32, #tpu.memory_space<vmem>>, vector<1x256xf32>
    %c16 = arith.constant 16 : index
    %299 = memref.load %arg4[%c16] : memref<98xf32, #tpu.memory_space<smem>>
    %300 = vector.broadcast %299 : f32 to vector<1x256xf32>
    %301 = arith.mulf %298, %300 : vector<1x256xf32>
    %c1_95 = arith.constant 1 : index
    %c111_96 = arith.constant 111 : index
    %302 = vector.load %arg6[%c1_95, %c111_96] : memref<2x512xf32, #tpu.memory_space<vmem>>, vector<1x256xf32>
    %c65 = arith.constant 65 : index
    %303 = memref.load %arg4[%c65] : memref<98xf32, #tpu.memory_space<smem>>
    %304 = vector.broadcast %303 : f32 to vector<1x256xf32>
    %305 = arith.mulf %302, %304 : vector<1x256xf32>
    %306 = arith.addf %301, %305 : vector<1x256xf32>
    %307 = arith.mulf %306, %37 : vector<1x256xf32>
    %308 = arith.addf %264, %307 : vector<1x256xf32>
    %c0_97 = arith.constant 0 : index
    %c112 = arith.constant 112 : index
    %309 = vector.load %arg6[%c0_97, %c112] : memref<2x512xf32, #tpu.memory_space<vmem>>, vector<1x256xf32>
    %c17 = arith.constant 17 : index
    %310 = memref.load %arg4[%c17] : memref<98xf32, #tpu.memory_space<smem>>
    %311 = vector.broadcast %310 : f32 to vector<1x256xf32>
    %312 = arith.mulf %309, %311 : vector<1x256xf32>
    %c1_98 = arith.constant 1 : index
    %c112_99 = arith.constant 112 : index
    %313 = vector.load %arg6[%c1_98, %c112_99] : memref<2x512xf32, #tpu.memory_space<vmem>>, vector<1x256xf32>
    %c66 = arith.constant 66 : index
    %314 = memref.load %arg4[%c66] : memref<98xf32, #tpu.memory_space<smem>>
    %315 = vector.broadcast %314 : f32 to vector<1x256xf32>
    %316 = arith.mulf %313, %315 : vector<1x256xf32>
    %317 = arith.addf %312, %316 : vector<1x256xf32>
    %318 = arith.mulf %317, %48 : vector<1x256xf32>
    %319 = arith.addf %275, %318 : vector<1x256xf32>
    %c0_100 = arith.constant 0 : index
    %c113 = arith.constant 113 : index
    %320 = vector.load %arg6[%c0_100, %c113] : memref<2x512xf32, #tpu.memory_space<vmem>>, vector<1x256xf32>
    %c18 = arith.constant 18 : index
    %321 = memref.load %arg4[%c18] : memref<98xf32, #tpu.memory_space<smem>>
    %322 = vector.broadcast %321 : f32 to vector<1x256xf32>
    %323 = arith.mulf %320, %322 : vector<1x256xf32>
    %c1_101 = arith.constant 1 : index
    %c113_102 = arith.constant 113 : index
    %324 = vector.load %arg6[%c1_101, %c113_102] : memref<2x512xf32, #tpu.memory_space<vmem>>, vector<1x256xf32>
    %c67 = arith.constant 67 : index
    %325 = memref.load %arg4[%c67] : memref<98xf32, #tpu.memory_space<smem>>
    %326 = vector.broadcast %325 : f32 to vector<1x256xf32>
    %327 = arith.mulf %324, %326 : vector<1x256xf32>
    %328 = arith.addf %323, %327 : vector<1x256xf32>
    %329 = arith.mulf %328, %59 : vector<1x256xf32>
    %330 = arith.addf %286, %329 : vector<1x256xf32>
    %c0_103 = arith.constant 0 : index
    %c114 = arith.constant 114 : index
    %331 = vector.load %arg6[%c0_103, %c114] : memref<2x512xf32, #tpu.memory_space<vmem>>, vector<1x256xf32>
    %c19 = arith.constant 19 : index
    %332 = memref.load %arg4[%c19] : memref<98xf32, #tpu.memory_space<smem>>
    %333 = vector.broadcast %332 : f32 to vector<1x256xf32>
    %334 = arith.mulf %331, %333 : vector<1x256xf32>
    %c1_104 = arith.constant 1 : index
    %c114_105 = arith.constant 114 : index
    %335 = vector.load %arg6[%c1_104, %c114_105] : memref<2x512xf32, #tpu.memory_space<vmem>>, vector<1x256xf32>
    %c68 = arith.constant 68 : index
    %336 = memref.load %arg4[%c68] : memref<98xf32, #tpu.memory_space<smem>>
    %337 = vector.broadcast %336 : f32 to vector<1x256xf32>
    %338 = arith.mulf %335, %337 : vector<1x256xf32>
    %339 = arith.addf %334, %338 : vector<1x256xf32>
    %340 = arith.mulf %339, %70 : vector<1x256xf32>
    %341 = arith.addf %297, %340 : vector<1x256xf32>
    %c0_106 = arith.constant 0 : index
    %c115 = arith.constant 115 : index
    %342 = vector.load %arg6[%c0_106, %c115] : memref<2x512xf32, #tpu.memory_space<vmem>>, vector<1x256xf32>
    %c20 = arith.constant 20 : index
    %343 = memref.load %arg4[%c20] : memref<98xf32, #tpu.memory_space<smem>>
    %344 = vector.broadcast %343 : f32 to vector<1x256xf32>
    %345 = arith.mulf %342, %344 : vector<1x256xf32>
    %c1_107 = arith.constant 1 : index
    %c115_108 = arith.constant 115 : index
    %346 = vector.load %arg6[%c1_107, %c115_108] : memref<2x512xf32, #tpu.memory_space<vmem>>, vector<1x256xf32>
    %c69 = arith.constant 69 : index
    %347 = memref.load %arg4[%c69] : memref<98xf32, #tpu.memory_space<smem>>
    %348 = vector.broadcast %347 : f32 to vector<1x256xf32>
    %349 = arith.mulf %346, %348 : vector<1x256xf32>
    %350 = arith.addf %345, %349 : vector<1x256xf32>
    %351 = arith.mulf %350, %81 : vector<1x256xf32>
    %352 = arith.addf %308, %351 : vector<1x256xf32>
    %c0_109 = arith.constant 0 : index
    %c125 = arith.constant 125 : index
    %353 = vector.load %arg6[%c0_109, %c125] : memref<2x512xf32, #tpu.memory_space<vmem>>, vector<1x256xf32>
    %c21 = arith.constant 21 : index
    %354 = memref.load %arg4[%c21] : memref<98xf32, #tpu.memory_space<smem>>
    %355 = vector.broadcast %354 : f32 to vector<1x256xf32>
    %356 = arith.mulf %353, %355 : vector<1x256xf32>
    %c1_110 = arith.constant 1 : index
    %c125_111 = arith.constant 125 : index
    %357 = vector.load %arg6[%c1_110, %c125_111] : memref<2x512xf32, #tpu.memory_space<vmem>>, vector<1x256xf32>
    %c70 = arith.constant 70 : index
    %358 = memref.load %arg4[%c70] : memref<98xf32, #tpu.memory_space<smem>>
    %359 = vector.broadcast %358 : f32 to vector<1x256xf32>
    %360 = arith.mulf %357, %359 : vector<1x256xf32>
    %361 = arith.addf %356, %360 : vector<1x256xf32>
    %362 = arith.mulf %361, %15 : vector<1x256xf32>
    %363 = arith.addf %319, %362 : vector<1x256xf32>
    %c0_112 = arith.constant 0 : index
    %c126 = arith.constant 126 : index
    %364 = vector.load %arg6[%c0_112, %c126] : memref<2x512xf32, #tpu.memory_space<vmem>>, vector<1x256xf32>
    %c22 = arith.constant 22 : index
    %365 = memref.load %arg4[%c22] : memref<98xf32, #tpu.memory_space<smem>>
    %366 = vector.broadcast %365 : f32 to vector<1x256xf32>
    %367 = arith.mulf %364, %366 : vector<1x256xf32>
    %c1_113 = arith.constant 1 : index
    %c126_114 = arith.constant 126 : index
    %368 = vector.load %arg6[%c1_113, %c126_114] : memref<2x512xf32, #tpu.memory_space<vmem>>, vector<1x256xf32>
    %c71 = arith.constant 71 : index
    %369 = memref.load %arg4[%c71] : memref<98xf32, #tpu.memory_space<smem>>
    %370 = vector.broadcast %369 : f32 to vector<1x256xf32>
    %371 = arith.mulf %368, %370 : vector<1x256xf32>
    %372 = arith.addf %367, %371 : vector<1x256xf32>
    %373 = arith.mulf %372, %26 : vector<1x256xf32>
    %374 = arith.addf %330, %373 : vector<1x256xf32>
    %c0_115 = arith.constant 0 : index
    %c127 = arith.constant 127 : index
    %375 = vector.load %arg6[%c0_115, %c127] : memref<2x512xf32, #tpu.memory_space<vmem>>, vector<1x256xf32>
    %c23 = arith.constant 23 : index
    %376 = memref.load %arg4[%c23] : memref<98xf32, #tpu.memory_space<smem>>
    %377 = vector.broadcast %376 : f32 to vector<1x256xf32>
    %378 = arith.mulf %375, %377 : vector<1x256xf32>
    %c1_116 = arith.constant 1 : index
    %c127_117 = arith.constant 127 : index
    %379 = vector.load %arg6[%c1_116, %c127_117] : memref<2x512xf32, #tpu.memory_space<vmem>>, vector<1x256xf32>
    %c72 = arith.constant 72 : index
    %380 = memref.load %arg4[%c72] : memref<98xf32, #tpu.memory_space<smem>>
    %381 = vector.broadcast %380 : f32 to vector<1x256xf32>
    %382 = arith.mulf %379, %381 : vector<1x256xf32>
    %383 = arith.addf %378, %382 : vector<1x256xf32>
    %384 = arith.mulf %383, %37 : vector<1x256xf32>
    %385 = arith.addf %341, %384 : vector<1x256xf32>
    %c0_118 = arith.constant 0 : index
    %c128_119 = arith.constant 128 : index
    %386 = vector.load %arg6[%c0_118, %c128_119] : memref<2x512xf32, #tpu.memory_space<vmem>>, vector<1x256xf32>
    %c24 = arith.constant 24 : index
    %387 = memref.load %arg4[%c24] : memref<98xf32, #tpu.memory_space<smem>>
    %388 = vector.broadcast %387 : f32 to vector<1x256xf32>
    %389 = arith.mulf %386, %388 : vector<1x256xf32>
    %c1_120 = arith.constant 1 : index
    %c128_121 = arith.constant 128 : index
    %390 = vector.load %arg6[%c1_120, %c128_121] : memref<2x512xf32, #tpu.memory_space<vmem>>, vector<1x256xf32>
    %c73 = arith.constant 73 : index
    %391 = memref.load %arg4[%c73] : memref<98xf32, #tpu.memory_space<smem>>
    %392 = vector.broadcast %391 : f32 to vector<1x256xf32>
    %393 = arith.mulf %390, %392 : vector<1x256xf32>
    %394 = arith.addf %389, %393 : vector<1x256xf32>
    %395 = arith.mulf %394, %48 : vector<1x256xf32>
    %396 = arith.addf %352, %395 : vector<1x256xf32>
    %c0_122 = arith.constant 0 : index
    %c129 = arith.constant 129 : index
    %397 = vector.load %arg6[%c0_122, %c129] : memref<2x512xf32, #tpu.memory_space<vmem>>, vector<1x256xf32>
    %c25 = arith.constant 25 : index
    %398 = memref.load %arg4[%c25] : memref<98xf32, #tpu.memory_space<smem>>
    %399 = vector.broadcast %398 : f32 to vector<1x256xf32>
    %400 = arith.mulf %397, %399 : vector<1x256xf32>
    %c1_123 = arith.constant 1 : index
    %c129_124 = arith.constant 129 : index
    %401 = vector.load %arg6[%c1_123, %c129_124] : memref<2x512xf32, #tpu.memory_space<vmem>>, vector<1x256xf32>
    %c74 = arith.constant 74 : index
    %402 = memref.load %arg4[%c74] : memref<98xf32, #tpu.memory_space<smem>>
    %403 = vector.broadcast %402 : f32 to vector<1x256xf32>
    %404 = arith.mulf %401, %403 : vector<1x256xf32>
    %405 = arith.addf %400, %404 : vector<1x256xf32>
    %406 = arith.mulf %405, %59 : vector<1x256xf32>
    %407 = arith.addf %363, %406 : vector<1x256xf32>
    %c0_125 = arith.constant 0 : index
    %c130 = arith.constant 130 : index
    %408 = vector.load %arg6[%c0_125, %c130] : memref<2x512xf32, #tpu.memory_space<vmem>>, vector<1x256xf32>
    %c26 = arith.constant 26 : index
    %409 = memref.load %arg4[%c26] : memref<98xf32, #tpu.memory_space<smem>>
    %410 = vector.broadcast %409 : f32 to vector<1x256xf32>
    %411 = arith.mulf %408, %410 : vector<1x256xf32>
    %c1_126 = arith.constant 1 : index
    %c130_127 = arith.constant 130 : index
    %412 = vector.load %arg6[%c1_126, %c130_127] : memref<2x512xf32, #tpu.memory_space<vmem>>, vector<1x256xf32>
    %c75 = arith.constant 75 : index
    %413 = memref.load %arg4[%c75] : memref<98xf32, #tpu.memory_space<smem>>
    %414 = vector.broadcast %413 : f32 to vector<1x256xf32>
    %415 = arith.mulf %412, %414 : vector<1x256xf32>
    %416 = arith.addf %411, %415 : vector<1x256xf32>
    %417 = arith.mulf %416, %70 : vector<1x256xf32>
    %418 = arith.addf %374, %417 : vector<1x256xf32>
    %c0_128 = arith.constant 0 : index
    %c131 = arith.constant 131 : index
    %419 = vector.load %arg6[%c0_128, %c131] : memref<2x512xf32, #tpu.memory_space<vmem>>, vector<1x256xf32>
    %c27 = arith.constant 27 : index
    %420 = memref.load %arg4[%c27] : memref<98xf32, #tpu.memory_space<smem>>
    %421 = vector.broadcast %420 : f32 to vector<1x256xf32>
    %422 = arith.mulf %419, %421 : vector<1x256xf32>
    %c1_129 = arith.constant 1 : index
    %c131_130 = arith.constant 131 : index
    %423 = vector.load %arg6[%c1_129, %c131_130] : memref<2x512xf32, #tpu.memory_space<vmem>>, vector<1x256xf32>
    %c76 = arith.constant 76 : index
    %424 = memref.load %arg4[%c76] : memref<98xf32, #tpu.memory_space<smem>>
    %425 = vector.broadcast %424 : f32 to vector<1x256xf32>
    %426 = arith.mulf %423, %425 : vector<1x256xf32>
    %427 = arith.addf %422, %426 : vector<1x256xf32>
    %428 = arith.mulf %427, %81 : vector<1x256xf32>
    %429 = arith.addf %385, %428 : vector<1x256xf32>
    %c0_131 = arith.constant 0 : index
    %c141 = arith.constant 141 : index
    %430 = vector.load %arg6[%c0_131, %c141] : memref<2x512xf32, #tpu.memory_space<vmem>>, vector<1x256xf32>
    %c28 = arith.constant 28 : index
    %431 = memref.load %arg4[%c28] : memref<98xf32, #tpu.memory_space<smem>>
    %432 = vector.broadcast %431 : f32 to vector<1x256xf32>
    %433 = arith.mulf %430, %432 : vector<1x256xf32>
    %c1_132 = arith.constant 1 : index
    %c141_133 = arith.constant 141 : index
    %434 = vector.load %arg6[%c1_132, %c141_133] : memref<2x512xf32, #tpu.memory_space<vmem>>, vector<1x256xf32>
    %c77_134 = arith.constant 77 : index
    %435 = memref.load %arg4[%c77_134] : memref<98xf32, #tpu.memory_space<smem>>
    %436 = vector.broadcast %435 : f32 to vector<1x256xf32>
    %437 = arith.mulf %434, %436 : vector<1x256xf32>
    %438 = arith.addf %433, %437 : vector<1x256xf32>
    %439 = arith.mulf %438, %15 : vector<1x256xf32>
    %440 = arith.addf %396, %439 : vector<1x256xf32>
    %c0_135 = arith.constant 0 : index
    %c142 = arith.constant 142 : index
    %441 = vector.load %arg6[%c0_135, %c142] : memref<2x512xf32, #tpu.memory_space<vmem>>, vector<1x256xf32>
    %c29 = arith.constant 29 : index
    %442 = memref.load %arg4[%c29] : memref<98xf32, #tpu.memory_space<smem>>
    %443 = vector.broadcast %442 : f32 to vector<1x256xf32>
    %444 = arith.mulf %441, %443 : vector<1x256xf32>
    %c1_136 = arith.constant 1 : index
    %c142_137 = arith.constant 142 : index
    %445 = vector.load %arg6[%c1_136, %c142_137] : memref<2x512xf32, #tpu.memory_space<vmem>>, vector<1x256xf32>
    %c78_138 = arith.constant 78 : index
    %446 = memref.load %arg4[%c78_138] : memref<98xf32, #tpu.memory_space<smem>>
    %447 = vector.broadcast %446 : f32 to vector<1x256xf32>
    %448 = arith.mulf %445, %447 : vector<1x256xf32>
    %449 = arith.addf %444, %448 : vector<1x256xf32>
    %450 = arith.mulf %449, %26 : vector<1x256xf32>
    %451 = arith.addf %407, %450 : vector<1x256xf32>
    %c0_139 = arith.constant 0 : index
    %c143 = arith.constant 143 : index
    %452 = vector.load %arg6[%c0_139, %c143] : memref<2x512xf32, #tpu.memory_space<vmem>>, vector<1x256xf32>
    %c30 = arith.constant 30 : index
    %453 = memref.load %arg4[%c30] : memref<98xf32, #tpu.memory_space<smem>>
    %454 = vector.broadcast %453 : f32 to vector<1x256xf32>
    %455 = arith.mulf %452, %454 : vector<1x256xf32>
    %c1_140 = arith.constant 1 : index
    %c143_141 = arith.constant 143 : index
    %456 = vector.load %arg6[%c1_140, %c143_141] : memref<2x512xf32, #tpu.memory_space<vmem>>, vector<1x256xf32>
    %c79_142 = arith.constant 79 : index
    %457 = memref.load %arg4[%c79_142] : memref<98xf32, #tpu.memory_space<smem>>
    %458 = vector.broadcast %457 : f32 to vector<1x256xf32>
    %459 = arith.mulf %456, %458 : vector<1x256xf32>
    %460 = arith.addf %455, %459 : vector<1x256xf32>
    %461 = arith.mulf %460, %37 : vector<1x256xf32>
    %462 = arith.addf %418, %461 : vector<1x256xf32>
    %c0_143 = arith.constant 0 : index
    %c144 = arith.constant 144 : index
    %463 = vector.load %arg6[%c0_143, %c144] : memref<2x512xf32, #tpu.memory_space<vmem>>, vector<1x256xf32>
    %c31 = arith.constant 31 : index
    %464 = memref.load %arg4[%c31] : memref<98xf32, #tpu.memory_space<smem>>
    %465 = vector.broadcast %464 : f32 to vector<1x256xf32>
    %466 = arith.mulf %463, %465 : vector<1x256xf32>
    %c1_144 = arith.constant 1 : index
    %c144_145 = arith.constant 144 : index
    %467 = vector.load %arg6[%c1_144, %c144_145] : memref<2x512xf32, #tpu.memory_space<vmem>>, vector<1x256xf32>
    %c80_146 = arith.constant 80 : index
    %468 = memref.load %arg4[%c80_146] : memref<98xf32, #tpu.memory_space<smem>>
    %469 = vector.broadcast %468 : f32 to vector<1x256xf32>
    %470 = arith.mulf %467, %469 : vector<1x256xf32>
    %471 = arith.addf %466, %470 : vector<1x256xf32>
    %472 = arith.mulf %471, %48 : vector<1x256xf32>
    %473 = arith.addf %429, %472 : vector<1x256xf32>
    %c0_147 = arith.constant 0 : index
    %c145 = arith.constant 145 : index
    %474 = vector.load %arg6[%c0_147, %c145] : memref<2x512xf32, #tpu.memory_space<vmem>>, vector<1x256xf32>
    %c32 = arith.constant 32 : index
    %475 = memref.load %arg4[%c32] : memref<98xf32, #tpu.memory_space<smem>>
    %476 = vector.broadcast %475 : f32 to vector<1x256xf32>
    %477 = arith.mulf %474, %476 : vector<1x256xf32>
    %c1_148 = arith.constant 1 : index
    %c145_149 = arith.constant 145 : index
    %478 = vector.load %arg6[%c1_148, %c145_149] : memref<2x512xf32, #tpu.memory_space<vmem>>, vector<1x256xf32>
    %c81_150 = arith.constant 81 : index
    %479 = memref.load %arg4[%c81_150] : memref<98xf32, #tpu.memory_space<smem>>
    %480 = vector.broadcast %479 : f32 to vector<1x256xf32>
    %481 = arith.mulf %478, %480 : vector<1x256xf32>
    %482 = arith.addf %477, %481 : vector<1x256xf32>
    %483 = arith.mulf %482, %59 : vector<1x256xf32>
    %484 = arith.addf %440, %483 : vector<1x256xf32>
    %c0_151 = arith.constant 0 : index
    %c146 = arith.constant 146 : index
    %485 = vector.load %arg6[%c0_151, %c146] : memref<2x512xf32, #tpu.memory_space<vmem>>, vector<1x256xf32>
    %c33 = arith.constant 33 : index
    %486 = memref.load %arg4[%c33] : memref<98xf32, #tpu.memory_space<smem>>
    %487 = vector.broadcast %486 : f32 to vector<1x256xf32>
    %488 = arith.mulf %485, %487 : vector<1x256xf32>
    %c1_152 = arith.constant 1 : index
    %c146_153 = arith.constant 146 : index
    %489 = vector.load %arg6[%c1_152, %c146_153] : memref<2x512xf32, #tpu.memory_space<vmem>>, vector<1x256xf32>
    %c82_154 = arith.constant 82 : index
    %490 = memref.load %arg4[%c82_154] : memref<98xf32, #tpu.memory_space<smem>>
    %491 = vector.broadcast %490 : f32 to vector<1x256xf32>
    %492 = arith.mulf %489, %491 : vector<1x256xf32>
    %493 = arith.addf %488, %492 : vector<1x256xf32>
    %494 = arith.mulf %493, %70 : vector<1x256xf32>
    %495 = arith.addf %451, %494 : vector<1x256xf32>
    %c0_155 = arith.constant 0 : index
    %c147 = arith.constant 147 : index
    %496 = vector.load %arg6[%c0_155, %c147] : memref<2x512xf32, #tpu.memory_space<vmem>>, vector<1x256xf32>
    %c34 = arith.constant 34 : index
    %497 = memref.load %arg4[%c34] : memref<98xf32, #tpu.memory_space<smem>>
    %498 = vector.broadcast %497 : f32 to vector<1x256xf32>
    %499 = arith.mulf %496, %498 : vector<1x256xf32>
    %c1_156 = arith.constant 1 : index
    %c147_157 = arith.constant 147 : index
    %500 = vector.load %arg6[%c1_156, %c147_157] : memref<2x512xf32, #tpu.memory_space<vmem>>, vector<1x256xf32>
    %c83_158 = arith.constant 83 : index
    %501 = memref.load %arg4[%c83_158] : memref<98xf32, #tpu.memory_space<smem>>
    %502 = vector.broadcast %501 : f32 to vector<1x256xf32>
    %503 = arith.mulf %500, %502 : vector<1x256xf32>
    %504 = arith.addf %499, %503 : vector<1x256xf32>
    %505 = arith.mulf %504, %81 : vector<1x256xf32>
    %506 = arith.addf %462, %505 : vector<1x256xf32>
    %c0_159 = arith.constant 0 : index
    %c157 = arith.constant 157 : index
    %507 = vector.load %arg6[%c0_159, %c157] : memref<2x512xf32, #tpu.memory_space<vmem>>, vector<1x256xf32>
    %c35 = arith.constant 35 : index
    %508 = memref.load %arg4[%c35] : memref<98xf32, #tpu.memory_space<smem>>
    %509 = vector.broadcast %508 : f32 to vector<1x256xf32>
    %510 = arith.mulf %507, %509 : vector<1x256xf32>
    %c1_160 = arith.constant 1 : index
    %c157_161 = arith.constant 157 : index
    %511 = vector.load %arg6[%c1_160, %c157_161] : memref<2x512xf32, #tpu.memory_space<vmem>>, vector<1x256xf32>
    %c84 = arith.constant 84 : index
    %512 = memref.load %arg4[%c84] : memref<98xf32, #tpu.memory_space<smem>>
    %513 = vector.broadcast %512 : f32 to vector<1x256xf32>
    %514 = arith.mulf %511, %513 : vector<1x256xf32>
    %515 = arith.addf %510, %514 : vector<1x256xf32>
    %516 = arith.mulf %515, %15 : vector<1x256xf32>
    %517 = arith.addf %473, %516 : vector<1x256xf32>
    %c0_162 = arith.constant 0 : index
    %c158 = arith.constant 158 : index
    %518 = vector.load %arg6[%c0_162, %c158] : memref<2x512xf32, #tpu.memory_space<vmem>>, vector<1x256xf32>
    %c36 = arith.constant 36 : index
    %519 = memref.load %arg4[%c36] : memref<98xf32, #tpu.memory_space<smem>>
    %520 = vector.broadcast %519 : f32 to vector<1x256xf32>
    %521 = arith.mulf %518, %520 : vector<1x256xf32>
    %c1_163 = arith.constant 1 : index
    %c158_164 = arith.constant 158 : index
    %522 = vector.load %arg6[%c1_163, %c158_164] : memref<2x512xf32, #tpu.memory_space<vmem>>, vector<1x256xf32>
    %c85 = arith.constant 85 : index
    %523 = memref.load %arg4[%c85] : memref<98xf32, #tpu.memory_space<smem>>
    %524 = vector.broadcast %523 : f32 to vector<1x256xf32>
    %525 = arith.mulf %522, %524 : vector<1x256xf32>
    %526 = arith.addf %521, %525 : vector<1x256xf32>
    %527 = arith.mulf %526, %26 : vector<1x256xf32>
    %528 = arith.addf %484, %527 : vector<1x256xf32>
    %c0_165 = arith.constant 0 : index
    %c159 = arith.constant 159 : index
    %529 = vector.load %arg6[%c0_165, %c159] : memref<2x512xf32, #tpu.memory_space<vmem>>, vector<1x256xf32>
    %c37 = arith.constant 37 : index
    %530 = memref.load %arg4[%c37] : memref<98xf32, #tpu.memory_space<smem>>
    %531 = vector.broadcast %530 : f32 to vector<1x256xf32>
    %532 = arith.mulf %529, %531 : vector<1x256xf32>
    %c1_166 = arith.constant 1 : index
    %c159_167 = arith.constant 159 : index
    %533 = vector.load %arg6[%c1_166, %c159_167] : memref<2x512xf32, #tpu.memory_space<vmem>>, vector<1x256xf32>
    %c86 = arith.constant 86 : index
    %534 = memref.load %arg4[%c86] : memref<98xf32, #tpu.memory_space<smem>>
    %535 = vector.broadcast %534 : f32 to vector<1x256xf32>
    %536 = arith.mulf %533, %535 : vector<1x256xf32>
    %537 = arith.addf %532, %536 : vector<1x256xf32>
    %538 = arith.mulf %537, %37 : vector<1x256xf32>
    %539 = arith.addf %495, %538 : vector<1x256xf32>
    %c0_168 = arith.constant 0 : index
    %c160 = arith.constant 160 : index
    %540 = vector.load %arg6[%c0_168, %c160] : memref<2x512xf32, #tpu.memory_space<vmem>>, vector<1x256xf32>
    %c38 = arith.constant 38 : index
    %541 = memref.load %arg4[%c38] : memref<98xf32, #tpu.memory_space<smem>>
    %542 = vector.broadcast %541 : f32 to vector<1x256xf32>
    %543 = arith.mulf %540, %542 : vector<1x256xf32>
    %c1_169 = arith.constant 1 : index
    %c160_170 = arith.constant 160 : index
    %544 = vector.load %arg6[%c1_169, %c160_170] : memref<2x512xf32, #tpu.memory_space<vmem>>, vector<1x256xf32>
    %c87 = arith.constant 87 : index
    %545 = memref.load %arg4[%c87] : memref<98xf32, #tpu.memory_space<smem>>
    %546 = vector.broadcast %545 : f32 to vector<1x256xf32>
    %547 = arith.mulf %544, %546 : vector<1x256xf32>
    %548 = arith.addf %543, %547 : vector<1x256xf32>
    %549 = arith.mulf %548, %48 : vector<1x256xf32>
    %550 = arith.addf %506, %549 : vector<1x256xf32>
    %c0_171 = arith.constant 0 : index
    %c161 = arith.constant 161 : index
    %551 = vector.load %arg6[%c0_171, %c161] : memref<2x512xf32, #tpu.memory_space<vmem>>, vector<1x256xf32>
    %c39 = arith.constant 39 : index
    %552 = memref.load %arg4[%c39] : memref<98xf32, #tpu.memory_space<smem>>
    %553 = vector.broadcast %552 : f32 to vector<1x256xf32>
    %554 = arith.mulf %551, %553 : vector<1x256xf32>
    %c1_172 = arith.constant 1 : index
    %c161_173 = arith.constant 161 : index
    %555 = vector.load %arg6[%c1_172, %c161_173] : memref<2x512xf32, #tpu.memory_space<vmem>>, vector<1x256xf32>
    %c88 = arith.constant 88 : index
    %556 = memref.load %arg4[%c88] : memref<98xf32, #tpu.memory_space<smem>>
    %557 = vector.broadcast %556 : f32 to vector<1x256xf32>
    %558 = arith.mulf %555, %557 : vector<1x256xf32>
    %559 = arith.addf %554, %558 : vector<1x256xf32>
    %560 = arith.mulf %559, %59 : vector<1x256xf32>
    %561 = arith.addf %517, %560 : vector<1x256xf32>
    %c0_174 = arith.constant 0 : index
    %c162 = arith.constant 162 : index
    %562 = vector.load %arg6[%c0_174, %c162] : memref<2x512xf32, #tpu.memory_space<vmem>>, vector<1x256xf32>
    %c40 = arith.constant 40 : index
    %563 = memref.load %arg4[%c40] : memref<98xf32, #tpu.memory_space<smem>>
    %564 = vector.broadcast %563 : f32 to vector<1x256xf32>
    %565 = arith.mulf %562, %564 : vector<1x256xf32>
    %c1_175 = arith.constant 1 : index
    %c162_176 = arith.constant 162 : index
    %566 = vector.load %arg6[%c1_175, %c162_176] : memref<2x512xf32, #tpu.memory_space<vmem>>, vector<1x256xf32>
    %c89 = arith.constant 89 : index
    %567 = memref.load %arg4[%c89] : memref<98xf32, #tpu.memory_space<smem>>
    %568 = vector.broadcast %567 : f32 to vector<1x256xf32>
    %569 = arith.mulf %566, %568 : vector<1x256xf32>
    %570 = arith.addf %565, %569 : vector<1x256xf32>
    %571 = arith.mulf %570, %70 : vector<1x256xf32>
    %572 = arith.addf %528, %571 : vector<1x256xf32>
    %c0_177 = arith.constant 0 : index
    %c163 = arith.constant 163 : index
    %573 = vector.load %arg6[%c0_177, %c163] : memref<2x512xf32, #tpu.memory_space<vmem>>, vector<1x256xf32>
    %c41 = arith.constant 41 : index
    %574 = memref.load %arg4[%c41] : memref<98xf32, #tpu.memory_space<smem>>
    %575 = vector.broadcast %574 : f32 to vector<1x256xf32>
    %576 = arith.mulf %573, %575 : vector<1x256xf32>
    %c1_178 = arith.constant 1 : index
    %c163_179 = arith.constant 163 : index
    %577 = vector.load %arg6[%c1_178, %c163_179] : memref<2x512xf32, #tpu.memory_space<vmem>>, vector<1x256xf32>
    %c90 = arith.constant 90 : index
    %578 = memref.load %arg4[%c90] : memref<98xf32, #tpu.memory_space<smem>>
    %579 = vector.broadcast %578 : f32 to vector<1x256xf32>
    %580 = arith.mulf %577, %579 : vector<1x256xf32>
    %581 = arith.addf %576, %580 : vector<1x256xf32>
    %582 = arith.mulf %581, %81 : vector<1x256xf32>
    %583 = arith.addf %539, %582 : vector<1x256xf32>
    %c0_180 = arith.constant 0 : index
    %c173 = arith.constant 173 : index
    %584 = vector.load %arg6[%c0_180, %c173] : memref<2x512xf32, #tpu.memory_space<vmem>>, vector<1x256xf32>
    %c42 = arith.constant 42 : index
    %585 = memref.load %arg4[%c42] : memref<98xf32, #tpu.memory_space<smem>>
    %586 = vector.broadcast %585 : f32 to vector<1x256xf32>
    %587 = arith.mulf %584, %586 : vector<1x256xf32>
    %c1_181 = arith.constant 1 : index
    %c173_182 = arith.constant 173 : index
    %588 = vector.load %arg6[%c1_181, %c173_182] : memref<2x512xf32, #tpu.memory_space<vmem>>, vector<1x256xf32>
    %c91 = arith.constant 91 : index
    %589 = memref.load %arg4[%c91] : memref<98xf32, #tpu.memory_space<smem>>
    %590 = vector.broadcast %589 : f32 to vector<1x256xf32>
    %591 = arith.mulf %588, %590 : vector<1x256xf32>
    %592 = arith.addf %587, %591 : vector<1x256xf32>
    %593 = arith.mulf %592, %15 : vector<1x256xf32>
    %594 = arith.addf %550, %593 : vector<1x256xf32>
    %c0_183 = arith.constant 0 : index
    %c174 = arith.constant 174 : index
    %595 = vector.load %arg6[%c0_183, %c174] : memref<2x512xf32, #tpu.memory_space<vmem>>, vector<1x256xf32>
    %c43 = arith.constant 43 : index
    %596 = memref.load %arg4[%c43] : memref<98xf32, #tpu.memory_space<smem>>
    %597 = vector.broadcast %596 : f32 to vector<1x256xf32>
    %598 = arith.mulf %595, %597 : vector<1x256xf32>
    %c1_184 = arith.constant 1 : index
    %c174_185 = arith.constant 174 : index
    %599 = vector.load %arg6[%c1_184, %c174_185] : memref<2x512xf32, #tpu.memory_space<vmem>>, vector<1x256xf32>
    %c92 = arith.constant 92 : index
    %600 = memref.load %arg4[%c92] : memref<98xf32, #tpu.memory_space<smem>>
    %601 = vector.broadcast %600 : f32 to vector<1x256xf32>
    %602 = arith.mulf %599, %601 : vector<1x256xf32>
    %603 = arith.addf %598, %602 : vector<1x256xf32>
    %604 = arith.mulf %603, %26 : vector<1x256xf32>
    %605 = arith.addf %561, %604 : vector<1x256xf32>
    %c0_186 = arith.constant 0 : index
    %c175 = arith.constant 175 : index
    %606 = vector.load %arg6[%c0_186, %c175] : memref<2x512xf32, #tpu.memory_space<vmem>>, vector<1x256xf32>
    %c44 = arith.constant 44 : index
    %607 = memref.load %arg4[%c44] : memref<98xf32, #tpu.memory_space<smem>>
    %608 = vector.broadcast %607 : f32 to vector<1x256xf32>
    %609 = arith.mulf %606, %608 : vector<1x256xf32>
    %c1_187 = arith.constant 1 : index
    %c175_188 = arith.constant 175 : index
    %610 = vector.load %arg6[%c1_187, %c175_188] : memref<2x512xf32, #tpu.memory_space<vmem>>, vector<1x256xf32>
    %c93_189 = arith.constant 93 : index
    %611 = memref.load %arg4[%c93_189] : memref<98xf32, #tpu.memory_space<smem>>
    %612 = vector.broadcast %611 : f32 to vector<1x256xf32>
    %613 = arith.mulf %610, %612 : vector<1x256xf32>
    %614 = arith.addf %609, %613 : vector<1x256xf32>
    %615 = arith.mulf %614, %37 : vector<1x256xf32>
    %616 = arith.addf %572, %615 : vector<1x256xf32>
    %c0_190 = arith.constant 0 : index
    %c176 = arith.constant 176 : index
    %617 = vector.load %arg6[%c0_190, %c176] : memref<2x512xf32, #tpu.memory_space<vmem>>, vector<1x256xf32>
    %c45 = arith.constant 45 : index
    %618 = memref.load %arg4[%c45] : memref<98xf32, #tpu.memory_space<smem>>
    %619 = vector.broadcast %618 : f32 to vector<1x256xf32>
    %620 = arith.mulf %617, %619 : vector<1x256xf32>
    %c1_191 = arith.constant 1 : index
    %c176_192 = arith.constant 176 : index
    %621 = vector.load %arg6[%c1_191, %c176_192] : memref<2x512xf32, #tpu.memory_space<vmem>>, vector<1x256xf32>
    %c94_193 = arith.constant 94 : index
    %622 = memref.load %arg4[%c94_193] : memref<98xf32, #tpu.memory_space<smem>>
    %623 = vector.broadcast %622 : f32 to vector<1x256xf32>
    %624 = arith.mulf %621, %623 : vector<1x256xf32>
    %625 = arith.addf %620, %624 : vector<1x256xf32>
    %626 = arith.mulf %625, %48 : vector<1x256xf32>
    %627 = arith.addf %583, %626 : vector<1x256xf32>
    %c0_194 = arith.constant 0 : index
    %c177 = arith.constant 177 : index
    %628 = vector.load %arg6[%c0_194, %c177] : memref<2x512xf32, #tpu.memory_space<vmem>>, vector<1x256xf32>
    %c46 = arith.constant 46 : index
    %629 = memref.load %arg4[%c46] : memref<98xf32, #tpu.memory_space<smem>>
    %630 = vector.broadcast %629 : f32 to vector<1x256xf32>
    %631 = arith.mulf %628, %630 : vector<1x256xf32>
    %c1_195 = arith.constant 1 : index
    %c177_196 = arith.constant 177 : index
    %632 = vector.load %arg6[%c1_195, %c177_196] : memref<2x512xf32, #tpu.memory_space<vmem>>, vector<1x256xf32>
    %c95_197 = arith.constant 95 : index
    %633 = memref.load %arg4[%c95_197] : memref<98xf32, #tpu.memory_space<smem>>
    %634 = vector.broadcast %633 : f32 to vector<1x256xf32>
    %635 = arith.mulf %632, %634 : vector<1x256xf32>
    %636 = arith.addf %631, %635 : vector<1x256xf32>
    %637 = arith.mulf %636, %59 : vector<1x256xf32>
    %638 = arith.addf %594, %637 : vector<1x256xf32>
    %c0_198 = arith.constant 0 : index
    %c178 = arith.constant 178 : index
    %639 = vector.load %arg6[%c0_198, %c178] : memref<2x512xf32, #tpu.memory_space<vmem>>, vector<1x256xf32>
    %c47 = arith.constant 47 : index
    %640 = memref.load %arg4[%c47] : memref<98xf32, #tpu.memory_space<smem>>
    %641 = vector.broadcast %640 : f32 to vector<1x256xf32>
    %642 = arith.mulf %639, %641 : vector<1x256xf32>
    %c1_199 = arith.constant 1 : index
    %c178_200 = arith.constant 178 : index
    %643 = vector.load %arg6[%c1_199, %c178_200] : memref<2x512xf32, #tpu.memory_space<vmem>>, vector<1x256xf32>
    %c96_201 = arith.constant 96 : index
    %644 = memref.load %arg4[%c96_201] : memref<98xf32, #tpu.memory_space<smem>>
    %645 = vector.broadcast %644 : f32 to vector<1x256xf32>
    %646 = arith.mulf %643, %645 : vector<1x256xf32>
    %647 = arith.addf %642, %646 : vector<1x256xf32>
    %648 = arith.mulf %647, %70 : vector<1x256xf32>
    %649 = arith.addf %605, %648 : vector<1x256xf32>
    %c0_202 = arith.constant 0 : index
    %c179 = arith.constant 179 : index
    %650 = vector.load %arg6[%c0_202, %c179] : memref<2x512xf32, #tpu.memory_space<vmem>>, vector<1x256xf32>
    %c48 = arith.constant 48 : index
    %651 = memref.load %arg4[%c48] : memref<98xf32, #tpu.memory_space<smem>>
    %652 = vector.broadcast %651 : f32 to vector<1x256xf32>
    %653 = arith.mulf %650, %652 : vector<1x256xf32>
    %c1_203 = arith.constant 1 : index
    %c179_204 = arith.constant 179 : index
    %654 = vector.load %arg6[%c1_203, %c179_204] : memref<2x512xf32, #tpu.memory_space<vmem>>, vector<1x256xf32>
    %c97_205 = arith.constant 97 : index
    %655 = memref.load %arg4[%c97_205] : memref<98xf32, #tpu.memory_space<smem>>
    %656 = vector.broadcast %655 : f32 to vector<1x256xf32>
    %657 = arith.mulf %654, %656 : vector<1x256xf32>
    %658 = arith.addf %653, %657 : vector<1x256xf32>
    %659 = arith.mulf %658, %81 : vector<1x256xf32>
    %660 = arith.addf %616, %659 : vector<1x256xf32>
    %661 = arith.addf %660, %627 : vector<1x256xf32>
    %662 = arith.addf %638, %649 : vector<1x256xf32>
    %663 = arith.addf %661, %662 : vector<1x256xf32>
    %664 = arith.negf %663 : vector<1x256xf32>
    %665 = math.exp %664 : vector<1x256xf32>
    %cst_206 = arith.constant 1.000000e+00 : f32
    %666 = vector.broadcast %cst_206 : f32 to vector<1x256xf32>
    %667 = arith.addf %666, %665 : vector<1x256xf32>
    %668 = arith.divf %666, %667 : vector<1x256xf32>
    %669 = vector.broadcast %668 : vector<1x256xf32> to vector<4x256xf32>
    %670 = arith.mulf %109, %669 : vector<4x256xf32>
    %671 = arith.index_cast %c0_i32_25 : i32 to index
    %c0_207 = arith.constant 0 : index
    %c0_208 = arith.constant 0 : index
    %672 = vector.load %arg5[%671, %c0_207, %c0_208] : memref<1x4x256xf32, #tpu.memory_space<vmem>>, vector<1x4x256xf32>
    %673 = vector.shape_cast %672 : vector<1x4x256xf32> to vector<4x256xf32>
    %674 = vector.shape_cast %670 : vector<4x256xf32> to vector<1x4x256xf32>
    tpu.vector_store %arg5[%671, %c0_207, %c0_208], %674 {strides = array<i32>} : memref<1x4x256xf32, #tpu.memory_space<vmem>>, vector<1x4x256xf32>,
    %c1_i32_209 = arith.constant 1 : i32
    return
  }
  func.func @transform_0(%arg0: i32) -> (i32, i32, i32) {
    %c0_i32 = arith.constant 0 : i32
    %c0_i32_0 = arith.constant 0 : i32
    %c0_i32_1 = arith.constant 0 : i32
    return %arg0, %c0_i32, %c0_i32_0 : i32, i32, i32
  }
  func.func @transform_1(%arg0: i32) -> (i32, i32) {
    %c0_i32 = arith.constant 0 : i32
    %c0_i32_0 = arith.constant 0 : i32
    %c0_i32_1 = arith.constant 0 : i32
    return %c0_i32, %c0_i32_0 : i32, i32
  }
  func.func @transform_2(%arg0: i32) -> (i32, i32) {
    %c0_i32 = arith.constant 0 : i32
    %c0_i32_0 = arith.constant 0 : i32
    %c0_i32_1 = arith.constant 0 : i32
    return %c0_i32, %c0_i32_0 : i32, i32
  }
  func.func @transform_3(%arg0: i32) -> i32 {
    %c0_i32 = arith.constant 0 : i32
    %c0_i32_0 = arith.constant 0 : i32
    return %c0_i32 : i32
  }
  func.func @transform_4(%arg0: i32) -> (i32, i32, i32) {
    %c0_i32 = arith.constant 0 : i32
    %c0_i32_0 = arith.constant 0 : i32
    %c0_i32_1 = arith.constant 0 : i32
    return %arg0, %c0_i32, %c0_i32_0 : i32, i32, i32
  }
}

</mosaic_0001>

<llo_original>
// kernel: tpu_custom_call.1
$region0: #{tpu_custom_call.1}
  #allocation0 [shape = 'u32[]', space=smem, size = 0x4, offset = 0x4, fixed_abs, tag = 'smem constant byte address 0x4 - core index']
  #allocation1 [shape = 'u32[72,128]{1,0:T(1,128)}', space=vmem, size = 0x9000, scoped, tag = 'internal scratch']
  #allocation2 [shape = 'f32[2,512]{1,0:T(2,128)}', space=vmem, size = 0x1000, scoped, tag = 'scratch operand']
  %s0 = inlined_call_operand.hbm [shape: f32[2,4,256], index: 0, kind: input, shape index: {}]
  %s1 = inlined_call_operand.vmem [shape: f32[4,1], index: 1, kind: input, shape index: {}]
  %s2 = inlined_call_operand.vmem [shape: f32[4,1], index: 2, kind: input, shape index: {}]
  %s3 = inlined_call_operand.vmem [shape: f32[98], index: 3, kind: input, shape index: {}]
  %s4 = inlined_call_operand.hbm [shape: f32[2,4,256], index: 4, kind: output, shape index: {}]
  %s5 = sld [smem:[#allocation0]]
  $region57: #{tpu_custom_call.1} parent=0
    _
  %s7 = ssub.s32 1, %s5
  %s8 = scalar_select 0, %s7, %s5
  $region1: #{tpu_custom_call.1} parent=0
    #allocation3 [shape = 'u8[8192]{0}', space=vmem, size = 0x2000, scoped, tag = 'input window, operand 0']
    #allocation4 [shape = 's32[2]{0}', space=sflag, size = 0x8, scoped, tag = 'scoped memory for tpu_custom_call.1']
    #allocation5 [shape = 's32[2]{0}', space=sflag, size = 0x8, scoped, tag = 'scoped memory for tpu_custom_call.1']
    #allocation6 [shape = 's32[2]{0}', space=sflag, size = 0x8, scoped, tag = 'scoped memory for tpu_custom_call.1']
    #allocation7 [shape = 'u8[512]{0}', space=smem, size = 0x200, scoped, tag = 'input window, operand 3, single buffered']
    #allocation8 [shape = 'u8[8192]{0}', space=vmem, size = 0x2000, scoped, tag = 'output window, operand 0']
    %9 = vsyncpa [#allocation4], 0
    %s10 = scalar_lea.sflag [#allocation4], 1
    %11 = vsyncpa %s10, 0
    %12 = vsyncpa [#allocation6], 0
    %13 = vsyncpa [#allocation5], 0
    %s14 = scalar_lea.sflag [#allocation5], 1
    %15 = vsyncpa %s14, 0
    loop: start=0, step=1, limit=4
    $region2: #{tpu_custom_call.1} parent=1 // loop_pre_header
      _
    $region3: #{tpu_custom_call.1} parent=1 // loop_header
      %s17 = sphi 0, %s21
      %p18 = scmp.ge.s32.totalorder %s17, 4
      %s27 = sphi 0, %s29
      %s30 = sphi 0, %s27
      %s31 = sphi 0, %s30
      %s47 = sphi 0, %s31
      %s51 = sphi 0, %s51
      %s53 = sphi 0, %s51
      %s54 = sphi 0, %s53
      %s68 = sphi 0, %s54
      %s72 = sphi 0, %s72
      %s74 = sphi 0, %s72
      %s75 = sphi 0, %s74
      %s89 = sphi 0, %s75
      %s93 = sphi 0, %s93
      %s95 = sphi 0, %s93
      %s96 = sphi 0, %s95
      %s110 = sphi 0, %s96
      %s116 = sphi 0, %s118
      %s119 = sphi 0, %s116
      %s120 = sphi 0, %s119
      %s136 = sphi 0, %s120
    $region4: #{tpu_custom_call.1} parent=1 // loop_header_branch
      %20 = sbr.rel (%p18) target = $region8
    $region5: #{tpu_custom_call.1} parent=1 // loop_body
      %s22 = ssub.s32 %s17, 1
      %s23 = ssub.s32 %s17, 2
      %s24 = sadd.s32 %s17, 1
      %s25 = ssub.s32 %s17, %s24
      %p26 = scmp.eq.s32.totalorder %s25, 0
      %s28 = sadd.s32 %s27, 1
      %s29 = scalar_select %p26, %s27, %s28
      %p32 = pneg %p26
      %p33 = scmp.eq.s32.totalorder %s17, 1
      %p34 = por %p32, %p33
      %p35 = scmp.ne.s32.totalorder %s27, %s30
      %p36 = scmp.eq.s32.totalorder %s17, 0
      %p37 = por %p35, %p36
      %p38 = scmp.ne.s32.totalorder %s27, %s30
      %p39 = scmp.eq.s32.totalorder %s22, 1
      %p40 = por %p38, %p39
      %p41 = scmp.ne.s32.totalorder %s30, %s31
      %p42 = scmp.eq.s32.totalorder %s22, 0
      %p43 = por %p41, %p42
      %p44 = scmp.ne.s32.totalorder %s30, %s31
      %p45 = scmp.eq.s32.totalorder %s23, 1
      %p46 = por %p44, %p45
      %p48 = scmp.ne.s32.totalorder %s31, %s47
      %p49 = scmp.eq.s32.totalorder %s23, 0
      %p50 = por %p48, %p49
      %s52 = sadd.s32 %s51, 1
      %p55 = scmp.eq.s32.totalorder %s17, 1
      %p56 = scmp.ne.s32.totalorder %s51, %s53
      %p57 = scmp.eq.s32.totalorder %s17, 0
      %p58 = por %p56, %p57
      %p59 = scmp.ne.s32.totalorder %s51, %s53
      %p60 = scmp.eq.s32.totalorder %s22, 1
      %p61 = por %p59, %p60
      %p62 = scmp.ne.s32.totalorder %s53, %s54
      %p63 = scmp.eq.s32.totalorder %s22, 0
      %p64 = por %p62, %p63
      %p65 = scmp.ne.s32.totalorder %s53, %s54
      %p66 = scmp.eq.s32.totalorder %s23, 1
      %p67 = por %p65, %p66
      %p69 = scmp.ne.s32.totalorder %s54, %s68
      %p70 = scmp.eq.s32.totalorder %s23, 0
      %p71 = por %p69, %p70
      %s73 = sadd.s32 %s72, 1
      %p76 = scmp.eq.s32.totalorder %s17, 1
      %p77 = scmp.ne.s32.totalorder %s72, %s74
      %p78 = scmp.eq.s32.totalorder %s17, 0
      %p79 = por %p77, %p78
      %p80 = scmp.ne.s32.totalorder %s72, %s74
      %p81 = scmp.eq.s32.totalorder %s22, 1
      %p82 = por %p80, %p81
      %p83 = scmp.ne.s32.totalorder %s74, %s75
      %p84 = scmp.eq.s32.totalorder %s22, 0
      %p85 = por %p83, %p84
      %p86 = scmp.ne.s32.totalorder %s74, %s75
      %p87 = scmp.eq.s32.totalorder %s23, 1
      %p88 = por %p86, %p87
      %p90 = scmp.ne.s32.totalorder %s75, %s89
      %p91 = scmp.eq.s32.totalorder %s23, 0
      %p92 = por %p90, %p91
      %s94 = sadd.s32 %s93, 1
      %p97 = scmp.eq.s32.totalorder %s17, 1
      %p98 = scmp.ne.s32.totalorder %s93, %s95
      %p99 = scmp.eq.s32.totalorder %s17, 0
      %p100 = por %p98, %p99
      %p101 = scmp.ne.s32.totalorder %s93, %s95
      %p102 = scmp.eq.s32.totalorder %s22, 1
      %p103 = por %p101, %p102
      %p104 = scmp.ne.s32.totalorder %s95, %s96
      %p105 = scmp.eq.s32.totalorder %s22, 0
      %p106 = por %p104, %p105
      %p107 = scmp.ne.s32.totalorder %s95, %s96
      %p108 = scmp.eq.s32.totalorder %s23, 1
      %p109 = por %p107, %p108
      %p111 = scmp.ne.s32.totalorder %s96, %s110
      %p112 = scmp.eq.s32.totalorder %s23, 0
      %p113 = por %p111, %p112
      %s114 = ssub.s32 %s17, %s24
      %p115 = scmp.eq.s32.totalorder %s114, 0
      %s117 = sadd.s32 %s116, 1
      %s118 = scalar_select %p115, %s116, %s117
      %p121 = pneg %p115
      %p122 = scmp.eq.s32.totalorder %s17, 1
      %p123 = por %p121, %p122
      %p124 = scmp.ne.s32.totalorder %s116, %s119
      %p125 = scmp.eq.s32.totalorder %s17, 0
      %p126 = por %p124, %p125
      %p127 = scmp.ne.s32.totalorder %s116, %s119
      %p128 = scmp.eq.s32.totalorder %s22, 1
      %p129 = por %p127, %p128
      %p130 = scmp.ne.s32.totalorder %s119, %s120
      %p131 = scmp.eq.s32.totalorder %s22, 0
      %p132 = por %p130, %p131
      %p133 = scmp.ne.s32.totalorder %s119, %s120
      %p134 = scmp.eq.s32.totalorder %s23, 1
      %p135 = por %p133, %p134
      %p137 = scmp.ne.s32.totalorder %s120, %s136
      %p138 = scmp.eq.s32.totalorder %s23, 0
      %p139 = por %p137, %p138
      %p140 = scmp.le.s32.totalorder 1, %s17
      %p141 = scmp.lt.s32.totalorder %s17, 3
      %p142 = pnand %p140, %p141
      %p143 = pneg %p142
      // Predicated region
      $region9: #{tpu_custom_call.1} parent=5 // pred_check
        _
      $region10: #{tpu_custom_call.1} parent=5 // pred_check_branch
        %145 = sbr.rel (%p142) target = $region12
      $region11: #{tpu_custom_call.1} parent=5 // pred_region
        %s146 = ssub.s32 %s17, 1
        // Predicated region
        $region13: #{tpu_custom_call.1} parent=11 // pred_check
          %p147 = pneg %p64
        $region14: #{tpu_custom_call.1} parent=11 // pred_check_branch
          %149 = sbr.rel (%p147) target = $region16
        $region15: #{tpu_custom_call.1} parent=11 // pred_region
          _
        $region16: #{tpu_custom_call.1} parent=11 // pred_fallthru
          _
        // Predicated region
        $region17: #{tpu_custom_call.1} parent=11 // pred_check
          %p150 = pneg %p85
        $region18: #{tpu_custom_call.1} parent=11 // pred_check_branch
          %152 = sbr.rel (%p150) target = $region20
        $region19: #{tpu_custom_call.1} parent=11 // pred_region
          _
        $region20: #{tpu_custom_call.1} parent=11 // pred_fallthru
          _
        // Predicated region
        $region21: #{tpu_custom_call.1} parent=11 // pred_check
          %p153 = pneg %p106
        $region22: #{tpu_custom_call.1} parent=11 // pred_check_branch
          %155 = sbr.rel (%p153) target = $region24
        $region23: #{tpu_custom_call.1} parent=11 // pred_region
          %157 = vsyncadd [#allocation6], 0
          %s159 = sshll.u32 %s3, 4
          %s160 = int_to_ptr.vmem [resolvable:$true] %s159
          %162 = dma.vmem_to_smem %s160, 16, [#allocation7], [#allocation6]
        $region24: #{tpu_custom_call.1} parent=11 // pred_fallthru
          _
      $region12: #{tpu_custom_call.1} parent=5 // pred_fallthru
        _
      %p163 = scmp.lt.s32.totalorder %s17, 2
      // Predicated region
      $region25: #{tpu_custom_call.1} parent=5 // pred_check
        %p164 = pneg %p163
      $region26: #{tpu_custom_call.1} parent=5 // pred_check_branch
        %166 = sbr.rel (%p164) target = $region28
      $region27: #{tpu_custom_call.1} parent=5 // pred_region
        // Predicated region
        $region29: #{tpu_custom_call.1} parent=27 // pred_check
          %p167 = pneg %p37
        $region30: #{tpu_custom_call.1} parent=27 // pred_check_branch
          %169 = sbr.rel (%p167) target = $region32
        $region31: #{tpu_custom_call.1} parent=27 // pred_region
          %s170 = sand.u32 %s27, 1
          %s171 = scalar_lea.sflag [#allocation4], %s170
          %s172 = sand.u32 %s27, 1
          %s173 = smul.addr %s172, 8
          %s174 = scalar_lea.vmem [#allocation3], %s173
          %176 = vsyncadd %s171, 0
          %s177 = smul.addr %s17, 2
          %s178 = smul.addr %s177, 4
          %s179 = scalar_lea.hbm %s0, %s178
          %s181 = sshll.u32 %s179, 4
          %s182 = int_to_ptr.hbm [resolvable:$true] %s181
          %s183 = sshll.u32 %s174, 4
          %s184 = int_to_ptr.vmem [resolvable:$true] %s183
          %186 = dma.hbm_to_vmem [thread:$0]  %s182, 128, %s184, %s171
        $region32: #{tpu_custom_call.1} parent=27 // pred_fallthru
          _
      $region28: #{tpu_custom_call.1} parent=5 // pred_fallthru
        _
      %p187 = scmp.le.s32.totalorder 1, %s17
      %p188 = scmp.lt.s32.totalorder %s17, 3
      %p189 = pnand %p187, %p188
      %p190 = pneg %p189
      // Predicated region
      $region33: #{tpu_custom_call.1} parent=5 // pred_check
        _
      $region34: #{tpu_custom_call.1} parent=5 // pred_check_branch
        %192 = sbr.rel (%p189) target = $region36
      $region35: #{tpu_custom_call.1} parent=5 // pred_region
        %s193 = ssub.s32 %s17, 1
        %s194 = sand.u32 %s30, 1
        %s195 = scalar_lea.sflag [#allocation4], %s194
        %s196 = sand.u32 %s30, 1
        %s197 = smul.addr %s196, 8
        %s198 = scalar_lea.vmem [#allocation3], %s197
        // Predicated region
        $region37: #{tpu_custom_call.1} parent=35 // pred_check
          %p199 = pneg %p43
        $region38: #{tpu_custom_call.1} parent=35 // pred_check_branch
          %201 = sbr.rel (%p199) target = $region40
        $region39: #{tpu_custom_call.1} parent=35 // pred_region
          %203 = dma.done %s195, 128
        $region40: #{tpu_custom_call.1} parent=35 // pred_fallthru
          _
        // Predicated region
        $region41: #{tpu_custom_call.1} parent=35 // pred_check
          %p204 = pneg %p106
        $region42: #{tpu_custom_call.1} parent=35 // pred_check_branch
          %206 = sbr.rel (%p204) target = $region44
        $region43: #{tpu_custom_call.1} parent=35 // pred_region
          %208 = dma.done [#allocation6], 16
        $region44: #{tpu_custom_call.1} parent=35 // pred_fallthru
          _
        %209 = sfence
        %s210 = sand.u32 %s30, 1
        %s211 = scalar_lea.sflag [#allocation4], %s210
        %s212 = sand.u32 %s30, 1
        %s213 = smul.addr %s212, 8
        %s214 = scalar_lea.vmem [#allocation3], %s213
        %p215 = pneg %p43
        %p216 = pneg %p40
        %p217 = pneg %p64
        %p218 = pneg %p61
        %p219 = pneg %p85
        %p220 = pneg %p82
        %p221 = pneg %p106
        %p222 = pneg %p103
        %p223 = pneg %p132
        %p224 = pneg %p129
        %s225 = sand.u32 %s119, 1
        %s226 = scalar_lea.sflag [#allocation5], %s225
        %s227 = sand.u32 %s119, 1
        %s228 = smul.addr %s227, 8
        %s229 = scalar_lea.vmem [#allocation8], %s228
        %230 = vst [vmem:[#allocation2] sm:$0xff] 0.0
        %v231 = vlaneseq
        %v232 = vand.u32 %v231, 127
        %v233 = vadd.s32 %v232, 128
        %v234 = vand.u32 %v232, 15
        %v235 = vand.u32 %v233, 15
        %v236 = vadd.s32 %v234, 4294967293
        %v237 = vadd.s32 %v235, 4294967293
        %vm238 = vcmp.ge.s32.totalorder %v236, 0
        %vm239 = vcmp.ge.s32.totalorder %v237, 0
        %vm240 = vcmp.lt.s32.totalorder %v236, 16
        %vm241 = vcmp.lt.s32.totalorder %v237, 16
        %vm242 = vmand %vm238, %vm240
        %vm243 = vmand %vm239, %vm241
        %v244 = vsel %vm242, 1, 0
        %v245 = vsel %vm243, 1, 0
        %v246 = vcvt.s32.f32 %v244
        %v247 = vcvt.s32.f32 %v245
        %v248 = vadd.s32 %v234, 4294967294
        %v249 = vadd.s32 %v235, 4294967294
        %vm250 = vcmp.ge.s32.totalorder %v248, 0
        %vm251 = vcmp.ge.s32.totalorder %v249, 0
        %vm252 = vcmp.lt.s32.totalorder %v248, 16
        %vm253 = vcmp.lt.s32.totalorder %v249, 16
        %vm254 = vmand %vm250, %vm252
        %vm255 = vmand %vm251, %vm253
        %v256 = vsel %vm254, 1, 0
        %v257 = vsel %vm255, 1, 0
        %v258 = vcvt.s32.f32 %v256
        %v259 = vcvt.s32.f32 %v257
        %v260 = vadd.s32 %v234, 4294967295
        %v261 = vadd.s32 %v235, 4294967295
        %vm262 = vcmp.ge.s32.totalorder %v260, 0
        %vm263 = vcmp.ge.s32.totalorder %v261, 0
        %vm264 = vcmp.lt.s32.totalorder %v260, 16
        %vm265 = vcmp.lt.s32.totalorder %v261, 16
        %vm266 = vmand %vm262, %vm264
        %vm267 = vmand %vm263, %vm265
        %v268 = vsel %vm266, 1, 0
        %v269 = vsel %vm267, 1, 0
        %v270 = vcvt.s32.f32 %v268
        %v271 = vcvt.s32.f32 %v269
        %vm272 = vcmp.ge.s32.totalorder %v234, 0
        %vm273 = vcmp.ge.s32.totalorder %v235, 0
        %vm274 = vcmp.lt.s32.totalorder %v234, 16
        %vm275 = vcmp.lt.s32.totalorder %v235, 16
        %vm276 = vmand %vm272, %vm274
        %vm277 = vmand %vm273, %vm275
        %v278 = vsel %vm276, 1, 0
        %v279 = vsel %vm277, 1, 0
        %v280 = vcvt.s32.f32 %v278
        %v281 = vcvt.s32.f32 %v279
        %v282 = vadd.s32 %v234, 1
        %v283 = vadd.s32 %v235, 1
        %vm284 = vcmp.ge.s32.totalorder %v282, 0
        %vm285 = vcmp.ge.s32.totalorder %v283, 0
        %vm286 = vcmp.lt.s32.totalorder %v282, 16
        %vm287 = vcmp.lt.s32.totalorder %v283, 16
        %vm288 = vmand %vm284, %vm286
        %vm289 = vmand %vm285, %vm287
        %v290 = vsel %vm288, 1, 0
        %v291 = vsel %vm289, 1, 0
        %v292 = vcvt.s32.f32 %v290
        %v293 = vcvt.s32.f32 %v291
        %v294 = vadd.s32 %v234, 2
        %v295 = vadd.s32 %v235, 2
        %vm296 = vcmp.ge.s32.totalorder %v294, 0
        %vm297 = vcmp.ge.s32.totalorder %v295, 0
        %vm298 = vcmp.lt.s32.totalorder %v294, 16
        %vm299 = vcmp.lt.s32.totalorder %v295, 16
        %vm300 = vmand %vm296, %vm298
        %vm301 = vmand %vm297, %vm299
        %v302 = vsel %vm300, 1, 0
        %v303 = vsel %vm301, 1, 0
        %v304 = vcvt.s32.f32 %v302
        %v305 = vcvt.s32.f32 %v303
        %v306 = vadd.s32 %v234, 3
        %v307 = vadd.s32 %v235, 3
        %vm308 = vcmp.ge.s32.totalorder %v306, 0
        %vm309 = vcmp.ge.s32.totalorder %v307, 0
        %vm310 = vcmp.lt.s32.totalorder %v306, 16
        %vm311 = vcmp.lt.s32.totalorder %v307, 16
        %vm312 = vmand %vm308, %vm310
        %vm313 = vmand %vm309, %vm311
        %v314 = vsel %vm312, 1, 0
        %v315 = vsel %vm313, 1, 0
        %v316 = vcvt.s32.f32 %v314
        %v317 = vcvt.s32.f32 %v315
        %v318 = vld [vmem:[%s1] sm:$0xf]
        %v319 = vld [vmem:[%s2] sm:$0xf]
        %v320 = vld [vmem:[%s198] sm:$0xff]
        %322 = vst [vmem:[#allocation1] ss:$2 sm:$0xff] %v320
        %v323 = vld.sshfl [vmem:[#allocation1] sm:$0xff pattern:$0x75316420]
        %v324 = vld.sshfl [vmem:[#allocation1 + $0x8] sm:$0xff pattern:$0x75316420]
        %vm327 = vcmask 1043456
        %v328 = vsel %vm327, %v323, 0.0
        %v329 = vsel %vm327, %v324, 0.0
        %v330 = vadd.f32 %v328, %v329
        %331 = vadd.xlane.f32.xlu0 %v330
        %v332 = vpop.xlane.xlu0 %331
        %v333 = vrcp.pop 256.0
        %v334 = vmul.f32 256.0, %v333
        %v335 = vsub.f32 1.0, %v334
        %v336 = vmul.f32 %v333, %v335
        %v337 = vadd.f32 %v333, %v336
        %vm338 = vweird.f32 %v333
        %v339 = vsel %vm338, %v333, %v337
        %v340 = vmul.f32 %v332, %v339
        %341 = vst [vmem:[#allocation1] ss:$2 sm:$0xff] %v320
        %v342 = vld.sshfl [vmem:[#allocation1] sm:$0xff pattern:$0x75316420]
        %v343 = vld.sshfl [vmem:[#allocation1 + $0x8] sm:$0xff pattern:$0x75316420]
        %v346 = vsel %vm327, %v342, -inf
        %v347 = vsel %vm327, %v343, -inf
        %v348 = vmax.f32 %v346, %v347
        %349 = vmax.xlane.f32.xlu0 %v348
        %v350 = vpop.xlane.xlu0 %349
        %v351 = vadd.f32 %v340, %v350
        %v352 = vmul.f32 %v318, %v351
        %vm353 = vcmask 3072
        %v354 = vsel %vm353, %v352, 0.0
        %v355 = vrot.slane %v354, 4
        %v356 = vadd.f32 %v354, %v355
        %v357 = vrot.slane %v356, 2
        %v358 = vadd.f32 %v356, %v357
        %v359 = vrot.slane %v358, 1
        %v360 = vadd.f32 %v358, %v359
        %v361 = vmax.f32 %v360, 0.0
        %v362 = vmul.f32 %v319, %v361
        %v363 = vadd.f32 %v362, 0.0
        %v364 = vxor.u32 %v363, 2147483648
        %v365 = vmul.f32 %v364, 1.442695
        %v366 = vpow.pop %v365
        %v367 = vadd.f32 %v366, 1.0
        %v368 = vrcp.pop %v367
        %v369 = vmul.f32 %v367, %v368
        %v370 = vsub.f32 1.0, %v369
        %v371 = vmul.f32 %v368, %v370
        %v372 = vadd.f32 %v368, %v371
        %vm373 = vweird.f32 %v367
        %vm374 = vweird.f32 %v368
        %vm375 = vmor %vm373, %vm374
        %v376 = vsel %vm375, %v368, %v372
        %v377 = vand.u32 2147483647, %v367
        %vm378 = vcmp.eq.f32.partialorder %v377, 8.507059e+37
        %v379 = vand.u32 %v367, 2147483648
        %v380 = vor.u32 1.1754944e-38, %v379
        %v381 = vsel %vm378, %v380, %v376
        %v382 = vmul.f32 1.0, %v381
        %384 = vset.pattern.permute.xlu0 0
        %385 = vperm.xlu0 %384, %v382
        %v386 = vpop.permute.xlu0 %385
        %v388 = vunpack.c.l.s4 839922192
        %v389 = vunpack.c.0.s8 %v388
        %v390 = vperm.slane %v386, %v389
        %v392 = vmul.f32 %v320, %v390
        %394 = vst [vmem:[#allocation1] ss:$2 sm:$0xff] %v392
        %v395 = vld.sshfl [vmem:[#allocation1] sm:$0xff pattern:$0x75316420]
        %v396 = vld.sshfl [vmem:[#allocation1 + $0x8] sm:$0xff pattern:$0x75316420]
        %v399 = vsel %vm327, %v395, 0.0
        %v400 = vrot.slane %v399, 4
        %v401 = vadd.f32 %v399, %v400
        %v402 = vrot.slane %v401, 2
        %v403 = vadd.f32 %v401, %v402
        %v404 = vrot.slane %v403, 1
        %v405 = vadd.f32 %v403, %v404
        %v406 = vsel %vm327, %v396, 0.0
        %v407 = vrot.slane %v406, 4
        %v408 = vadd.f32 %v406, %v407
        %v409 = vrot.slane %v408, 2
        %v410 = vadd.f32 %v408, %v409
        %v411 = vrot.slane %v410, 1
        %v412 = vadd.f32 %v410, %v411
        %v413 = vrcp.pop 4.0
        %v414 = vmul.f32 4.0, %v413
        %v415 = vsub.f32 1.0, %v414
        %v416 = vmul.f32 %v413, %v415
        %v417 = vadd.f32 %v413, %v416
        %vm418 = vweird.f32 %v413
        %v419 = vsel %vm418, %v413, %v417
        %v420 = vmul.f32 %v405, %v419
        %v421 = vmul.f32 %v412, %v419
        %422 = vst [vmem:[#allocation1] ss:$2 sm:$0xff] %v392
        %v423 = vld.sshfl [vmem:[#allocation1] sm:$0xff pattern:$0x75316420]
        %v424 = vld.sshfl [vmem:[#allocation1 + $0x8] sm:$0xff pattern:$0x75316420]
        %v427 = vsel %vm327, %v423, -inf
        %v428 = vrot.slane %v427, 4
        %v429 = vmax.f32 %v427, %v428
        %v430 = vrot.slane %v429, 2
        %v431 = vmax.f32 %v429, %v430
        %v432 = vrot.slane %v431, 1
        %v433 = vmax.f32 %v431, %v432
        %v434 = vsel %vm327, %v424, -inf
        %v435 = vrot.slane %v434, 4
        %v436 = vmax.f32 %v434, %v435
        %v437 = vrot.slane %v436, 2
        %v438 = vmax.f32 %v436, %v437
        %v439 = vrot.slane %v438, 1
        %v440 = vmax.f32 %v438, %v439
        %v443 = vrot.slane %v421, 7
        %vm444 = vcmask 1040384
        %v445 = vsel %vm444, %v420, %v443
        %v447 = vlaneseq
        %vm448 = vcmp.ge.s32.totalorder %v447, 0
        %vm449 = vcmp.lt.s32.totalorder %v447, 256
        %vm450 = vmand %vm448, %vm449
        %s451 = scalar_lea.vmem [#allocation2], 2
        %452 = vst.msk [vmem:[%s451] ss:$2 sm:$0x3] %vm450, %v445
        %v455 = vrot.slane %v440, 7
        %v456 = vsel %vm444, %v433, %v455
        %s458 = scalar_lea.vmem [#allocation2], 3
        %459 = vst.msk [vmem:[%s458] ss:$2 sm:$0x3] %vm450, %v456
        %v460 = vld [vmem:[#allocation2] ss:$2 sm:$0x7]
        %s461 = sld [smem:[#allocation7]]
        %v462 = vstv %s461
        %v463 = vmul.f32 %v460, %v462
        %s464 = scalar_lea.vmem [#allocation2], 1
        %v465 = vld [vmem:[%s464] ss:$2 sm:$0x7]
        %s466 = sld [smem:[#allocation7 + $0x31]]
        %v467 = vstv %s466
        %v468 = vmul.f32 %v465, %v467
        %v469 = vadd.f32 %v463, %v468
        %v472 = vrot.slane %v247, 7
        %v473 = vsel %vm444, %v246, %v472
        %474 = vrot.lane.b32.xlu0 %v473, 77
        %v475 = vpop.permute.xlu0 %474
        %v476 = vrot.slane %v475, 7
        %vm477 = vcmask 629760
        %v478 = vsel %vm477, %v476, %v475
        %v480 = vmul.f32 %v469, %v478
        %v481 = vadd.f32 %v480, 0.0
        %s482 = sld [smem:[#allocation7 + $0x1]]
        %v483 = vstv %s482
        %v484 = vmul.f32 %v460, %v483
        %s485 = sld [smem:[#allocation7 + $0x32]]
        %v486 = vstv %s485
        %v487 = vmul.f32 %v465, %v486
        %v488 = vadd.f32 %v484, %v487
        %v491 = vrot.slane %v259, 7
        %v492 = vsel %vm444, %v258, %v491
        %493 = vrot.lane.b32.xlu0 %v492, 78
        %v494 = vpop.permute.xlu0 %493
        %v495 = vrot.slane %v494, 7
        %vm496 = vcmask 637952
        %v497 = vsel %vm496, %v495, %v494
        %v499 = vmul.f32 %v488, %v497
        %v500 = vadd.f32 %v499, 0.0
        %s501 = sld [smem:[#allocation7 + $0x2]]
        %v502 = vstv %s501
        %v503 = vmul.f32 %v460, %v502
        %s504 = sld [smem:[#allocation7 + $0x33]]
        %v505 = vstv %s504
        %v506 = vmul.f32 %v465, %v505
        %v507 = vadd.f32 %v503, %v506
        %v510 = vrot.slane %v271, 7
        %v511 = vsel %vm444, %v270, %v510
        %512 = vrot.lane.b32.xlu0 %v511, 79
        %v513 = vpop.permute.xlu0 %512
        %v514 = vrot.slane %v513, 7
        %vm515 = vcmask 646144
        %v516 = vsel %vm515, %v514, %v513
        %v518 = vmul.f32 %v507, %v516
        %v519 = vadd.f32 %v518, 0.0
        %s520 = sld [smem:[#allocation7 + $0x3]]
        %v521 = vstv %s520
        %v522 = vmul.f32 %v460, %v521
        %s523 = sld [smem:[#allocation7 + $0x34]]
        %v524 = vstv %s523
        %v525 = vmul.f32 %v465, %v524
        %v526 = vadd.f32 %v522, %v525
        %v529 = vrot.slane %v281, 7
        %v530 = vsel %vm444, %v280, %v529
        %531 = vrot.lane.b32.xlu0 %v530, 80
        %v532 = vpop.permute.xlu0 %531
        %v533 = vrot.slane %v532, 7
        %vm534 = vcmask 654336
        %v535 = vsel %vm534, %v533, %v532
        %v537 = vmul.f32 %v526, %v535
        %v538 = vadd.f32 %v537, 0.0
        %s539 = sld [smem:[#allocation7 + $0x4]]
        %v540 = vstv %s539
        %v541 = vmul.f32 %v460, %v540
        %s542 = sld [smem:[#allocation7 + $0x35]]
        %v543 = vstv %s542
        %v544 = vmul.f32 %v465, %v543
        %v545 = vadd.f32 %v541, %v544
        %v548 = vrot.slane %v293, 7
        %v549 = vsel %vm444, %v292, %v548
        %550 = vrot.lane.b32.xlu0 %v549, 81
        %v551 = vpop.permute.xlu0 %550
        %v552 = vrot.slane %v551, 7
        %vm553 = vcmask 662528
        %v554 = vsel %vm553, %v552, %v551
        %v556 = vmul.f32 %v545, %v554
        %558 = vrot.lane.b32.xlu0 %v556, 124
        %v559 = vpop.permute.xlu0 %558
        %v560 = vrot.slane %v559, 1
        %vm561 = vcmask 1014784
        %v562 = vsel %vm561, %v559, %v560
        %v564 = vadd.f32 %v481, %v562
        %s565 = sld [smem:[#allocation7 + $0x5]]
        %v566 = vstv %s565
        %v567 = vmul.f32 %v460, %v566
        %s568 = sld [smem:[#allocation7 + $0x36]]
        %v569 = vstv %s568
        %v570 = vmul.f32 %v465, %v569
        %v571 = vadd.f32 %v567, %v570
        %v574 = vrot.slane %v305, 7
        %v575 = vsel %vm444, %v304, %v574
        %576 = vrot.lane.b32.xlu0 %v575, 82
        %v577 = vpop.permute.xlu0 %576
        %v578 = vrot.slane %v577, 7
        %vm579 = vcmask 670720
        %v580 = vsel %vm579, %v578, %v577
        %v582 = vmul.f32 %v571, %v580
        %584 = vrot.lane.b32.xlu0 %v582, 124
        %v585 = vpop.permute.xlu0 %584
        %v586 = vrot.slane %v585, 1
        %v587 = vsel %vm561, %v585, %v586
        %v589 = vadd.f32 %v500, %v587
        %s590 = sld [smem:[#allocation7 + $0x6]]
        %v591 = vstv %s590
        %v592 = vmul.f32 %v460, %v591
        %s593 = sld [smem:[#allocation7 + $0x37]]
        %v594 = vstv %s593
        %v595 = vmul.f32 %v465, %v594
        %v596 = vadd.f32 %v592, %v595
        %v599 = vrot.slane %v317, 7
        %v600 = vsel %vm444, %v316, %v599
        %601 = vrot.lane.b32.xlu0 %v600, 83
        %v602 = vpop.permute.xlu0 %601
        %v603 = vrot.slane %v602, 7
        %vm604 = vcmask 678912
        %v605 = vsel %vm604, %v603, %v602
        %v607 = vmul.f32 %v596, %v605
        %609 = vrot.lane.b32.xlu0 %v607, 124
        %v610 = vpop.permute.xlu0 %609
        %v611 = vrot.slane %v610, 1
        %v612 = vsel %vm561, %v610, %v611
        %v614 = vadd.f32 %v519, %v612
        %s615 = sld [smem:[#allocation7 + $0x7]]
        %v616 = vstv %s615
        %v617 = vmul.f32 %v460, %v616
        %s618 = sld [smem:[#allocation7 + $0x38]]
        %v619 = vstv %s618
        %v620 = vmul.f32 %v465, %v619
        %v621 = vadd.f32 %v617, %v620
        %622 = vrot.lane.b32.xlu0 %v473, 93
        %v623 = vpop.permute.xlu0 %622
        %v624 = vrot.slane %v623, 7
        %vm625 = vcmask 760832
        %v626 = vsel %vm625, %v624, %v623
        %v628 = vmul.f32 %v621, %v626
        %630 = vrot.lane.b32.xlu0 %v628, 115
        %v631 = vpop.permute.xlu0 %630
        %v632 = vrot.slane %v631, 1
        %vm633 = vcmask 941056
        %v634 = vsel %vm633, %v631, %v632
        %v636 = vadd.f32 %v538, %v634
        %s637 = sld [smem:[#allocation7 + $0x8]]
        %v638 = vstv %s637
        %v639 = vmul.f32 %v460, %v638
        %s640 = sld [smem:[#allocation7 + $0x39]]
        %v641 = vstv %s640
        %v642 = vmul.f32 %v465, %v641
        %v643 = vadd.f32 %v639, %v642
        %644 = vrot.lane.b32.xlu0 %v492, 94
        %v645 = vpop.permute.xlu0 %644
        %v646 = vrot.slane %v645, 7
        %vm647 = vcmask 769024
        %v648 = vsel %vm647, %v646, %v645
        %v650 = vmul.f32 %v643, %v648
        %652 = vrot.lane.b32.xlu0 %v650, 111
        %v653 = vpop.permute.xlu0 %652
        %v654 = vrot.slane %v653, 1
        %vm655 = vcmask 908288
        %v656 = vsel %vm655, %v653, %v654
        %v658 = vadd.f32 %v564, %v656
        %s659 = sld [smem:[#allocation7 + $0x9]]
        %v660 = vstv %s659
        %v661 = vmul.f32 %v460, %v660
        %s662 = sld [smem:[#allocation7 + $0x3a]]
        %v663 = vstv %s662
        %v664 = vmul.f32 %v465, %v663
        %v665 = vadd.f32 %v661, %v664
        %666 = vrot.lane.b32.xlu0 %v511, 95
        %v667 = vpop.permute.xlu0 %666
        %v668 = vrot.slane %v667, 7
        %vm669 = vcmask 777216
        %v670 = vsel %vm669, %v668, %v667
        %v672 = vmul.f32 %v665, %v670
        %674 = vrot.lane.b32.xlu0 %v672, 111
        %v675 = vpop.permute.xlu0 %674
        %v676 = vrot.slane %v675, 1
        %v677 = vsel %vm655, %v675, %v676
        %v679 = vadd.f32 %v589, %v677
        %s680 = sld [smem:[#allocation7 + $0xa]]
        %v681 = vstv %s680
        %v682 = vmul.f32 %v460, %v681
        %s683 = sld [smem:[#allocation7 + $0x3b]]
        %v684 = vstv %s683
        %v685 = vmul.f32 %v465, %v684
        %v686 = vadd.f32 %v682, %v685
        %687 = vrot.lane.b32.xlu0 %v530, 96
        %v688 = vpop.permute.xlu0 %687
        %v689 = vrot.slane %v688, 7
        %vm690 = vcmask 785408
        %v691 = vsel %vm690, %v689, %v688
        %v693 = vmul.f32 %v686, %v691
        %695 = vrot.lane.b32.xlu0 %v693, 111
        %v696 = vpop.permute.xlu0 %695
        %v697 = vrot.slane %v696, 1
        %v698 = vsel %vm655, %v696, %v697
        %v700 = vadd.f32 %v614, %v698
        %s701 = sld [smem:[#allocation7 + $0xb]]
        %v702 = vstv %s701
        %v703 = vmul.f32 %v460, %v702
        %s704 = sld [smem:[#allocation7 + $0x3c]]
        %v705 = vstv %s704
        %v706 = vmul.f32 %v465, %v705
        %v707 = vadd.f32 %v703, %v706
        %708 = vrot.lane.b32.xlu0 %v549, 97
        %v709 = vpop.permute.xlu0 %708
        %v710 = vrot.slane %v709, 7
        %vm711 = vcmask 793600
        %v712 = vsel %vm711, %v710, %v709
        %v714 = vmul.f32 %v707, %v712
        %716 = vrot.lane.b32.xlu0 %v714, 111
        %v717 = vpop.permute.xlu0 %716
        %v718 = vrot.slane %v717, 1
        %v719 = vsel %vm655, %v717, %v718
        %v721 = vadd.f32 %v636, %v719
        %s722 = sld [smem:[#allocation7 + $0xc]]
        %v723 = vstv %s722
        %v724 = vmul.f32 %v460, %v723
        %s725 = sld [smem:[#allocation7 + $0x3d]]
        %v726 = vstv %s725
        %v727 = vmul.f32 %v465, %v726
        %v728 = vadd.f32 %v724, %v727
        %729 = vrot.lane.b32.xlu0 %v575, 98
        %v730 = vpop.permute.xlu0 %729
        %v731 = vrot.slane %v730, 7
        %vm732 = vcmask 801792
        %v733 = vsel %vm732, %v731, %v730
        %v735 = vmul.f32 %v728, %v733
        %737 = vrot.lane.b32.xlu0 %v735, 107
        %v738 = vpop.permute.xlu0 %737
        %v739 = vrot.slane %v738, 1
        %vm740 = vcmask 875520
        %v741 = vsel %vm740, %v738, %v739
        %v743 = vadd.f32 %v658, %v741
        %s744 = sld [smem:[#allocation7 + $0xd]]
        %v745 = vstv %s744
        %v746 = vmul.f32 %v460, %v745
        %s747 = sld [smem:[#allocation7 + $0x3e]]
        %v748 = vstv %s747
        %v749 = vmul.f32 %v465, %v748
        %v750 = vadd.f32 %v746, %v749
        %751 = vrot.lane.b32.xlu0 %v600, 99
        %v752 = vpop.permute.xlu0 %751
        %v753 = vrot.slane %v752, 7
        %vm754 = vcmask 809984
        %v755 = vsel %vm754, %v753, %v752
        %v757 = vmul.f32 %v750, %v755
        %759 = vrot.lane.b32.xlu0 %v757, 107
        %v760 = vpop.permute.xlu0 %759
        %v761 = vrot.slane %v760, 1
        %v762 = vsel %vm740, %v760, %v761
        %v764 = vadd.f32 %v679, %v762
        %s765 = sld [smem:[#allocation7 + $0xe]]
        %v766 = vstv %s765
        %v767 = vmul.f32 %v460, %v766
        %s768 = sld [smem:[#allocation7 + $0x3f]]
        %v769 = vstv %s768
        %v770 = vmul.f32 %v465, %v769
        %v771 = vadd.f32 %v767, %v770
        %772 = vrot.lane.b32.xlu0 %v473, 109
        %v773 = vpop.permute.xlu0 %772
        %v774 = vrot.slane %v773, 7
        %vm775 = vcmask 891904
        %v776 = vsel %vm775, %v774, %v773
        %v778 = vmul.f32 %v771, %v776
        %780 = vrot.lane.b32.xlu0 %v778, 98
        %v781 = vpop.permute.xlu0 %780
        %v782 = vrot.slane %v781, 1
        %v783 = vsel %vm732, %v781, %v782
        %v785 = vadd.f32 %v700, %v783
        %s786 = sld [smem:[#allocation7 + $0xf]]
        %v787 = vstv %s786
        %v788 = vmul.f32 %v460, %v787
        %s789 = sld [smem:[#allocation7 + $0x40]]
        %v790 = vstv %s789
        %v791 = vmul.f32 %v465, %v790
        %v792 = vadd.f32 %v788, %v791
        %793 = vrot.lane.b32.xlu0 %v492, 110
        %v794 = vpop.permute.xlu0 %793
        %v795 = vrot.slane %v794, 7
        %vm796 = vcmask 900096
        %v797 = vsel %vm796, %v795, %v794
        %v799 = vmul.f32 %v792, %v797
        %801 = vrot.lane.b32.xlu0 %v799, 98
        %v802 = vpop.permute.xlu0 %801
        %v803 = vrot.slane %v802, 1
        %v804 = vsel %vm732, %v802, %v803
        %v806 = vadd.f32 %v721, %v804
        %s807 = sld [smem:[#allocation7 + $0x10]]
        %v808 = vstv %s807
        %v809 = vmul.f32 %v460, %v808
        %s810 = sld [smem:[#allocation7 + $0x41]]
        %v811 = vstv %s810
        %v812 = vmul.f32 %v465, %v811
        %v813 = vadd.f32 %v809, %v812
        %814 = vrot.lane.b32.xlu0 %v511, 111
        %v815 = vpop.permute.xlu0 %814
        %v816 = vrot.slane %v815, 7
        %v817 = vsel %vm655, %v816, %v815
        %v819 = vmul.f32 %v813, %v817
        %821 = vrot.lane.b32.xlu0 %v819, 94
        %v822 = vpop.permute.xlu0 %821
        %v823 = vrot.slane %v822, 1
        %v824 = vsel %vm647, %v822, %v823
        %v826 = vadd.f32 %v743, %v824
        %s827 = sld [smem:[#allocation7 + $0x11]]
        %v828 = vstv %s827
        %v829 = vmul.f32 %v460, %v828
        %s830 = sld [smem:[#allocation7 + $0x42]]
        %v831 = vstv %s830
        %v832 = vmul.f32 %v465, %v831
        %v833 = vadd.f32 %v829, %v832
        %834 = vrot.lane.b32.xlu0 %v530, 112
        %v835 = vpop.permute.xlu0 %834
        %v836 = vrot.slane %v835, 7
        %vm837 = vcmask 916480
        %v838 = vsel %vm837, %v836, %v835
        %v840 = vmul.f32 %v833, %v838
        %842 = vrot.lane.b32.xlu0 %v840, 94
        %v843 = vpop.permute.xlu0 %842
        %v844 = vrot.slane %v843, 1
        %v845 = vsel %vm647, %v843, %v844
        %v847 = vadd.f32 %v764, %v845
        %s848 = sld [smem:[#allocation7 + $0x12]]
        %v849 = vstv %s848
        %v850 = vmul.f32 %v460, %v849
        %s851 = sld [smem:[#allocation7 + $0x43]]
        %v852 = vstv %s851
        %v853 = vmul.f32 %v465, %v852
        %v854 = vadd.f32 %v850, %v853
        %855 = vrot.lane.b32.xlu0 %v549, 113
        %v856 = vpop.permute.xlu0 %855
        %v857 = vrot.slane %v856, 7
        %vm858 = vcmask 924672
        %v859 = vsel %vm858, %v857, %v856
        %v861 = vmul.f32 %v854, %v859
        %863 = vrot.lane.b32.xlu0 %v861, 94
        %v864 = vpop.permute.xlu0 %863
        %v865 = vrot.slane %v864, 1
        %v866 = vsel %vm647, %v864, %v865
        %v868 = vadd.f32 %v785, %v866
        %s869 = sld [smem:[#allocation7 + $0x13]]
        %v870 = vstv %s869
        %v871 = vmul.f32 %v460, %v870
        %s872 = sld [smem:[#allocation7 + $0x44]]
        %v873 = vstv %s872
        %v874 = vmul.f32 %v465, %v873
        %v875 = vadd.f32 %v871, %v874
        %876 = vrot.lane.b32.xlu0 %v575, 114
        %v877 = vpop.permute.xlu0 %876
        %v878 = vrot.slane %v877, 7
        %vm879 = vcmask 932864
        %v880 = vsel %vm879, %v878, %v877
        %v882 = vmul.f32 %v875, %v880
        %884 = vrot.lane.b32.xlu0 %v882, 94
        %v885 = vpop.permute.xlu0 %884
        %v886 = vrot.slane %v885, 1
        %v887 = vsel %vm647, %v885, %v886
        %v889 = vadd.f32 %v806, %v887
        %s890 = sld [smem:[#allocation7 + $0x14]]
        %v891 = vstv %s890
        %v892 = vmul.f32 %v460, %v891
        %s893 = sld [smem:[#allocation7 + $0x45]]
        %v894 = vstv %s893
        %v895 = vmul.f32 %v465, %v894
        %v896 = vadd.f32 %v892, %v895
        %897 = vrot.lane.b32.xlu0 %v600, 115
        %v898 = vpop.permute.xlu0 %897
        %v899 = vrot.slane %v898, 7
        %v900 = vsel %vm633, %v899, %v898
        %v902 = vmul.f32 %v896, %v900
        %904 = vrot.lane.b32.xlu0 %v902, 90
        %v905 = vpop.permute.xlu0 %904
        %v906 = vrot.slane %v905, 1
        %vm907 = vcmask 736256
        %v908 = vsel %vm907, %v905, %v906
        %v910 = vadd.f32 %v826, %v908
        %s911 = sld [smem:[#allocation7 + $0x15]]
        %v912 = vstv %s911
        %v913 = vmul.f32 %v460, %v912
        %s914 = sld [smem:[#allocation7 + $0x46]]
        %v915 = vstv %s914
        %v916 = vmul.f32 %v465, %v915
        %v917 = vadd.f32 %v913, %v916
        %918 = vrot.lane.b32.xlu0 %v473, 125
        %v919 = vpop.permute.xlu0 %918
        %v920 = vrot.slane %v919, 7
        %vm921 = vcmask 1022976
        %v922 = vsel %vm921, %v920, %v919
        %v924 = vmul.f32 %v917, %v922
        %926 = vrot.lane.b32.xlu0 %v924, 81
        %v927 = vpop.permute.xlu0 %926
        %v928 = vrot.slane %v927, 1
        %v929 = vsel %vm553, %v927, %v928
        %v931 = vadd.f32 %v847, %v929
        %s932 = sld [smem:[#allocation7 + $0x16]]
        %v933 = vstv %s932
        %v934 = vmul.f32 %v460, %v933
        %s935 = sld [smem:[#allocation7 + $0x47]]
        %v936 = vstv %s935
        %v937 = vmul.f32 %v465, %v936
        %v938 = vadd.f32 %v934, %v937
        %939 = vrot.lane.b32.xlu0 %v492, 126
        %v940 = vpop.permute.xlu0 %939
        %v941 = vrot.slane %v940, 7
        %vm942 = vcmask 1031168
        %v943 = vsel %vm942, %v941, %v940
        %v945 = vmul.f32 %v938, %v943
        %947 = vrot.lane.b32.xlu0 %v945, 81
        %v948 = vpop.permute.xlu0 %947
        %v949 = vrot.slane %v948, 1
        %v950 = vsel %vm553, %v948, %v949
        %v952 = vadd.f32 %v868, %v950
        %s953 = sld [smem:[#allocation7 + $0x17]]
        %v954 = vstv %s953
        %v955 = vmul.f32 %v460, %v954
        %s956 = sld [smem:[#allocation7 + $0x48]]
        %v957 = vstv %s956
        %v958 = vmul.f32 %v465, %v957
        %v959 = vadd.f32 %v955, %v958
        %960 = vrot.lane.b32.xlu0 %v511, 127
        %v961 = vpop.permute.xlu0 %960
        %v962 = vrot.slane %v961, 7
        %vm963 = vcmask 1039360
        %v964 = vsel %vm963, %v962, %v961
        %v966 = vmul.f32 %v959, %v964
        %968 = vrot.lane.b32.xlu0 %v966, 81
        %v969 = vpop.permute.xlu0 %968
        %v970 = vrot.slane %v969, 1
        %v971 = vsel %vm553, %v969, %v970
        %v973 = vadd.f32 %v889, %v971
        %v974 = vld [vmem:[%s451] ss:$2 sm:$0x3]
        %s975 = sld [smem:[#allocation7 + $0x18]]
        %v976 = vstv %s975
        %v977 = vmul.f32 %v974, %v976
        %v978 = vld [vmem:[%s458] ss:$2 sm:$0x3]
        %s979 = sld [smem:[#allocation7 + $0x49]]
        %v980 = vstv %s979
        %v981 = vmul.f32 %v978, %v980
        %v982 = vadd.f32 %v977, %v981
        %v984 = vmul.f32 %v982, %v530
        %986 = vrot.lane.b32.xlu0 %v984, 77
        %v987 = vpop.permute.xlu0 %986
        %v988 = vrot.slane %v987, 7
        %v989 = vsel %vm477, %v988, %v987
        %v991 = vadd.f32 %v910, %v989
        %s992 = scalar_lea.vmem [#allocation2], 2
        %v993 = vld [vmem:[%s992] ss:$2 sm:$0x7]
        %s994 = sld [smem:[#allocation7 + $0x19]]
        %v995 = vstv %s994
        %v996 = vmul.f32 %v993, %v995
        %s997 = scalar_lea.vmem [#allocation2], 3
        %v998 = vld [vmem:[%s997] ss:$2 sm:$0x7]
        %s999 = sld [smem:[#allocation7 + $0x4a]]
        %v1000 = vstv %s999
        %v1001 = vmul.f32 %v998, %v1000
        %v1002 = vadd.f32 %v996, %v1001
        %1003 = vrot.lane.b32.xlu0 %v549, 1
        %v1004 = vpop.permute.xlu0 %1003
        %v1005 = vrot.slane %v1004, 7
        %vm1006 = vcmask 7168
        %v1007 = vsel %vm1006, %v1005, %v1004
        %v1009 = vmul.f32 %v1002, %v1007
        %1011 = vrot.lane.b32.xlu0 %v1009, 77
        %v1012 = vpop.permute.xlu0 %1011
        %v1013 = vrot.slane %v1012, 7
        %v1014 = vsel %vm477, %v1013, %v1012
        %v1016 = vadd.f32 %v931, %v1014
        %s1017 = sld [smem:[#allocation7 + $0x1a]]
        %v1018 = vstv %s1017
        %v1019 = vmul.f32 %v993, %v1018
        %s1020 = sld [smem:[#allocation7 + $0x4b]]
        %v1021 = vstv %s1020
        %v1022 = vmul.f32 %v998, %v1021
        %v1023 = vadd.f32 %v1019, %v1022
        %1024 = vrot.lane.b32.xlu0 %v575, 2
        %v1025 = vpop.permute.xlu0 %1024
        %v1026 = vrot.slane %v1025, 7
        %vm1027 = vcmask 15360
        %v1028 = vsel %vm1027, %v1026, %v1025
        %v1030 = vmul.f32 %v1023, %v1028
        %1032 = vrot.lane.b32.xlu0 %v1030, 77
        %v1033 = vpop.permute.xlu0 %1032
        %v1034 = vrot.slane %v1033, 7
        %v1035 = vsel %vm477, %v1034, %v1033
        %v1037 = vadd.f32 %v952, %v1035
        %s1038 = sld [smem:[#allocation7 + $0x1b]]
        %v1039 = vstv %s1038
        %v1040 = vmul.f32 %v993, %v1039
        %s1041 = sld [smem:[#allocation7 + $0x4c]]
        %v1042 = vstv %s1041
        %v1043 = vmul.f32 %v998, %v1042
        %v1044 = vadd.f32 %v1040, %v1043
        %1045 = vrot.lane.b32.xlu0 %v600, 3
        %v1046 = vpop.permute.xlu0 %1045
        %v1047 = vrot.slane %v1046, 7
        %vm1048 = vcmask 23552
        %v1049 = vsel %vm1048, %v1047, %v1046
        %v1051 = vmul.f32 %v1044, %v1049
        %1053 = vrot.lane.b32.xlu0 %v1051, 77
        %v1054 = vpop.permute.xlu0 %1053
        %v1055 = vrot.slane %v1054, 7
        %v1056 = vsel %vm477, %v1055, %v1054
        %v1058 = vadd.f32 %v973, %v1056
        %s1059 = sld [smem:[#allocation7 + $0x1c]]
        %v1060 = vstv %s1059
        %v1061 = vmul.f32 %v993, %v1060
        %s1062 = sld [smem:[#allocation7 + $0x4d]]
        %v1063 = vstv %s1062
        %v1064 = vmul.f32 %v998, %v1063
        %v1065 = vadd.f32 %v1061, %v1064
        %1066 = vrot.lane.b32.xlu0 %v473, 13
        %v1067 = vpop.permute.xlu0 %1066
        %v1068 = vrot.slane %v1067, 7
        %vm1069 = vcmask 105472
        %v1070 = vsel %vm1069, %v1068, %v1067
        %v1072 = vmul.f32 %v1065, %v1070
        %1074 = vrot.lane.b32.xlu0 %v1072, 64
        %v1075 = vpop.permute.xlu0 %1074
        %v1076 = vrot.slane %v1075, 7
        %vm1077 = vcmask 523264
        %v1078 = vsel %vm1077, %v1076, %v1075
        %v1080 = vadd.f32 %v991, %v1078
        %s1081 = sld [smem:[#allocation7 + $0x1d]]
        %v1082 = vstv %s1081
        %v1083 = vmul.f32 %v993, %v1082
        %s1084 = sld [smem:[#allocation7 + $0x4e]]
        %v1085 = vstv %s1084
        %v1086 = vmul.f32 %v998, %v1085
        %v1087 = vadd.f32 %v1083, %v1086
        %1088 = vrot.lane.b32.xlu0 %v492, 14
        %v1089 = vpop.permute.xlu0 %1088
        %v1090 = vrot.slane %v1089, 7
        %vm1091 = vcmask 113664
        %v1092 = vsel %vm1091, %v1090, %v1089
        %v1094 = vmul.f32 %v1087, %v1092
        %1096 = vrot.lane.b32.xlu0 %v1094, 64
        %v1097 = vpop.permute.xlu0 %1096
        %v1098 = vrot.slane %v1097, 7
        %v1099 = vsel %vm1077, %v1098, %v1097
        %v1101 = vadd.f32 %v1016, %v1099
        %s1102 = sld [smem:[#allocation7 + $0x1e]]
        %v1103 = vstv %s1102
        %v1104 = vmul.f32 %v993, %v1103
        %s1105 = sld [smem:[#allocation7 + $0x4f]]
        %v1106 = vstv %s1105
        %v1107 = vmul.f32 %v998, %v1106
        %v1108 = vadd.f32 %v1104, %v1107
        %1109 = vrot.lane.b32.xlu0 %v511, 15
        %v1110 = vpop.permute.xlu0 %1109
        %v1111 = vrot.slane %v1110, 7
        %vm1112 = vcmask 121856
        %v1113 = vsel %vm1112, %v1111, %v1110
        %v1115 = vmul.f32 %v1108, %v1113
        %1117 = vrot.lane.b32.xlu0 %v1115, 64
        %v1118 = vpop.permute.xlu0 %1117
        %v1119 = vrot.slane %v1118, 7
        %v1120 = vsel %vm1077, %v1119, %v1118
        %v1122 = vadd.f32 %v1037, %v1120
        %s1123 = sld [smem:[#allocation7 + $0x1f]]
        %v1124 = vstv %s1123
        %v1125 = vmul.f32 %v993, %v1124
        %s1126 = sld [smem:[#allocation7 + $0x50]]
        %v1127 = vstv %s1126
        %v1128 = vmul.f32 %v998, %v1127
        %v1129 = vadd.f32 %v1125, %v1128
        %1130 = vrot.lane.b32.xlu0 %v530, 16
        %v1131 = vpop.permute.xlu0 %1130
        %v1132 = vrot.slane %v1131, 7
        %vm1133 = vcmask 130048
        %v1134 = vsel %vm1133, %v1132, %v1131
        %v1136 = vmul.f32 %v1129, %v1134
        %1138 = vrot.lane.b32.xlu0 %v1136, 64
        %v1139 = vpop.permute.xlu0 %1138
        %v1140 = vrot.slane %v1139, 7
        %v1141 = vsel %vm1077, %v1140, %v1139
        %v1143 = vadd.f32 %v1058, %v1141
        %s1144 = sld [smem:[#allocation7 + $0x20]]
        %v1145 = vstv %s1144
        %v1146 = vmul.f32 %v993, %v1145
        %s1147 = sld [smem:[#allocation7 + $0x51]]
        %v1148 = vstv %s1147
        %v1149 = vmul.f32 %v998, %v1148
        %v1150 = vadd.f32 %v1146, %v1149
        %1151 = vrot.lane.b32.xlu0 %v549, 17
        %v1152 = vpop.permute.xlu0 %1151
        %v1153 = vrot.slane %v1152, 7
        %vm1154 = vcmask 138240
        %v1155 = vsel %vm1154, %v1153, %v1152
        %v1157 = vmul.f32 %v1150, %v1155
        %1159 = vrot.lane.b32.xlu0 %v1157, 60
        %v1160 = vpop.permute.xlu0 %1159
        %v1161 = vrot.slane %v1160, 7
        %vm1162 = vcmask 490496
        %v1163 = vsel %vm1162, %v1161, %v1160
        %v1165 = vadd.f32 %v1080, %v1163
        %s1166 = sld [smem:[#allocation7 + $0x21]]
        %v1167 = vstv %s1166
        %v1168 = vmul.f32 %v993, %v1167
        %s1169 = sld [smem:[#allocation7 + $0x52]]
        %v1170 = vstv %s1169
        %v1171 = vmul.f32 %v998, %v1170
        %v1172 = vadd.f32 %v1168, %v1171
        %1173 = vrot.lane.b32.xlu0 %v575, 18
        %v1174 = vpop.permute.xlu0 %1173
        %v1175 = vrot.slane %v1174, 7
        %vm1176 = vcmask 146432
        %v1177 = vsel %vm1176, %v1175, %v1174
        %v1179 = vmul.f32 %v1172, %v1177
        %1181 = vrot.lane.b32.xlu0 %v1179, 60
        %v1182 = vpop.permute.xlu0 %1181
        %v1183 = vrot.slane %v1182, 7
        %v1184 = vsel %vm1162, %v1183, %v1182
        %v1186 = vadd.f32 %v1101, %v1184
        %s1187 = sld [smem:[#allocation7 + $0x22]]
        %v1188 = vstv %s1187
        %v1189 = vmul.f32 %v993, %v1188
        %s1190 = sld [smem:[#allocation7 + $0x53]]
        %v1191 = vstv %s1190
        %v1192 = vmul.f32 %v998, %v1191
        %v1193 = vadd.f32 %v1189, %v1192
        %1194 = vrot.lane.b32.xlu0 %v600, 19
        %v1195 = vpop.permute.xlu0 %1194
        %v1196 = vrot.slane %v1195, 7
        %vm1197 = vcmask 154624
        %v1198 = vsel %vm1197, %v1196, %v1195
        %v1200 = vmul.f32 %v1193, %v1198
        %1202 = vrot.lane.b32.xlu0 %v1200, 60
        %v1203 = vpop.permute.xlu0 %1202
        %v1204 = vrot.slane %v1203, 7
        %v1205 = vsel %vm1162, %v1204, %v1203
        %v1207 = vadd.f32 %v1122, %v1205
        %s1208 = sld [smem:[#allocation7 + $0x23]]
        %v1209 = vstv %s1208
        %v1210 = vmul.f32 %v993, %v1209
        %s1211 = sld [smem:[#allocation7 + $0x54]]
        %v1212 = vstv %s1211
        %v1213 = vmul.f32 %v998, %v1212
        %v1214 = vadd.f32 %v1210, %v1213
        %1215 = vrot.lane.b32.xlu0 %v473, 29
        %v1216 = vpop.permute.xlu0 %1215
        %v1217 = vrot.slane %v1216, 7
        %vm1218 = vcmask 236544
        %v1219 = vsel %vm1218, %v1217, %v1216
        %v1221 = vmul.f32 %v1214, %v1219
        %1223 = vrot.lane.b32.xlu0 %v1221, 51
        %v1224 = vpop.permute.xlu0 %1223
        %v1225 = vrot.slane %v1224, 7
        %vm1226 = vcmask 416768
        %v1227 = vsel %vm1226, %v1225, %v1224
        %v1229 = vadd.f32 %v1143, %v1227
        %s1230 = sld [smem:[#allocation7 + $0x24]]
        %v1231 = vstv %s1230
        %v1232 = vmul.f32 %v993, %v1231
        %s1233 = sld [smem:[#allocation7 + $0x55]]
        %v1234 = vstv %s1233
        %v1235 = vmul.f32 %v998, %v1234
        %v1236 = vadd.f32 %v1232, %v1235
        %1237 = vrot.lane.b32.xlu0 %v492, 30
        %v1238 = vpop.permute.xlu0 %1237
        %v1239 = vrot.slane %v1238, 7
        %vm1240 = vcmask 244736
        %v1241 = vsel %vm1240, %v1239, %v1238
        %v1243 = vmul.f32 %v1236, %v1241
        %1245 = vrot.lane.b32.xlu0 %v1243, 47
        %v1246 = vpop.permute.xlu0 %1245
        %v1247 = vrot.slane %v1246, 7
        %vm1248 = vcmask 384000
        %v1249 = vsel %vm1248, %v1247, %v1246
        %v1251 = vadd.f32 %v1165, %v1249
        %s1252 = sld [smem:[#allocation7 + $0x25]]
        %v1253 = vstv %s1252
        %v1254 = vmul.f32 %v993, %v1253
        %s1255 = sld [smem:[#allocation7 + $0x56]]
        %v1256 = vstv %s1255
        %v1257 = vmul.f32 %v998, %v1256
        %v1258 = vadd.f32 %v1254, %v1257
        %1259 = vrot.lane.b32.xlu0 %v511, 31
        %v1260 = vpop.permute.xlu0 %1259
        %v1261 = vrot.slane %v1260, 7
        %vm1262 = vcmask 252928
        %v1263 = vsel %vm1262, %v1261, %v1260
        %v1265 = vmul.f32 %v1258, %v1263
        %1267 = vrot.lane.b32.xlu0 %v1265, 47
        %v1268 = vpop.permute.xlu0 %1267
        %v1269 = vrot.slane %v1268, 7
        %v1270 = vsel %vm1248, %v1269, %v1268
        %v1272 = vadd.f32 %v1186, %v1270
        %s1273 = sld [smem:[#allocation7 + $0x26]]
        %v1274 = vstv %s1273
        %v1275 = vmul.f32 %v993, %v1274
        %s1276 = sld [smem:[#allocation7 + $0x57]]
        %v1277 = vstv %s1276
        %v1278 = vmul.f32 %v998, %v1277
        %v1279 = vadd.f32 %v1275, %v1278
        %1280 = vrot.lane.b32.xlu0 %v530, 32
        %v1281 = vpop.permute.xlu0 %1280
        %v1282 = vrot.slane %v1281, 7
        %vm1283 = vcmask 261120
        %v1284 = vsel %vm1283, %v1282, %v1281
        %v1286 = vmul.f32 %v1279, %v1284
        %1288 = vrot.lane.b32.xlu0 %v1286, 47
        %v1289 = vpop.permute.xlu0 %1288
        %v1290 = vrot.slane %v1289, 7
        %v1291 = vsel %vm1248, %v1290, %v1289
        %v1293 = vadd.f32 %v1207, %v1291
        %s1294 = sld [smem:[#allocation7 + $0x27]]
        %v1295 = vstv %s1294
        %v1296 = vmul.f32 %v993, %v1295
        %s1297 = sld [smem:[#allocation7 + $0x58]]
        %v1298 = vstv %s1297
        %v1299 = vmul.f32 %v998, %v1298
        %v1300 = vadd.f32 %v1296, %v1299
        %1301 = vrot.lane.b32.xlu0 %v549, 33
        %v1302 = vpop.permute.xlu0 %1301
        %v1303 = vrot.slane %v1302, 7
        %vm1304 = vcmask 269312
        %v1305 = vsel %vm1304, %v1303, %v1302
        %v1307 = vmul.f32 %v1300, %v1305
        %1309 = vrot.lane.b32.xlu0 %v1307, 47
        %v1310 = vpop.permute.xlu0 %1309
        %v1311 = vrot.slane %v1310, 7
        %v1312 = vsel %vm1248, %v1311, %v1310
        %v1314 = vadd.f32 %v1229, %v1312
        %s1315 = sld [smem:[#allocation7 + $0x28]]
        %v1316 = vstv %s1315
        %v1317 = vmul.f32 %v993, %v1316
        %s1318 = sld [smem:[#allocation7 + $0x59]]
        %v1319 = vstv %s1318
        %v1320 = vmul.f32 %v998, %v1319
        %v1321 = vadd.f32 %v1317, %v1320
        %1322 = vrot.lane.b32.xlu0 %v575, 34
        %v1323 = vpop.permute.xlu0 %1322
        %v1324 = vrot.slane %v1323, 7
        %vm1325 = vcmask 277504
        %v1326 = vsel %vm1325, %v1324, %v1323
        %v1328 = vmul.f32 %v1321, %v1326
        %1330 = vrot.lane.b32.xlu0 %v1328, 43
        %v1331 = vpop.permute.xlu0 %1330
        %v1332 = vrot.slane %v1331, 7
        %vm1333 = vcmask 351232
        %v1334 = vsel %vm1333, %v1332, %v1331
        %v1336 = vadd.f32 %v1251, %v1334
        %s1337 = sld [smem:[#allocation7 + $0x29]]
        %v1338 = vstv %s1337
        %v1339 = vmul.f32 %v993, %v1338
        %s1340 = sld [smem:[#allocation7 + $0x5a]]
        %v1341 = vstv %s1340
        %v1342 = vmul.f32 %v998, %v1341
        %v1343 = vadd.f32 %v1339, %v1342
        %1344 = vrot.lane.b32.xlu0 %v600, 35
        %v1345 = vpop.permute.xlu0 %1344
        %v1346 = vrot.slane %v1345, 7
        %vm1347 = vcmask 285696
        %v1348 = vsel %vm1347, %v1346, %v1345
        %v1350 = vmul.f32 %v1343, %v1348
        %1352 = vrot.lane.b32.xlu0 %v1350, 43
        %v1353 = vpop.permute.xlu0 %1352
        %v1354 = vrot.slane %v1353, 7
        %v1355 = vsel %vm1333, %v1354, %v1353
        %v1357 = vadd.f32 %v1272, %v1355
        %s1358 = sld [smem:[#allocation7 + $0x2a]]
        %v1359 = vstv %s1358
        %v1360 = vmul.f32 %v993, %v1359
        %s1361 = sld [smem:[#allocation7 + $0x5b]]
        %v1362 = vstv %s1361
        %v1363 = vmul.f32 %v998, %v1362
        %v1364 = vadd.f32 %v1360, %v1363
        %1365 = vrot.lane.b32.xlu0 %v473, 45
        %v1366 = vpop.permute.xlu0 %1365
        %v1367 = vrot.slane %v1366, 7
        %vm1368 = vcmask 367616
        %v1369 = vsel %vm1368, %v1367, %v1366
        %v1371 = vmul.f32 %v1364, %v1369
        %1373 = vrot.lane.b32.xlu0 %v1371, 34
        %v1374 = vpop.permute.xlu0 %1373
        %v1375 = vrot.slane %v1374, 7
        %v1376 = vsel %vm1325, %v1375, %v1374
        %v1378 = vadd.f32 %v1293, %v1376
        %s1379 = sld [smem:[#allocation7 + $0x2b]]
        %v1380 = vstv %s1379
        %v1381 = vmul.f32 %v993, %v1380
        %s1382 = sld [smem:[#allocation7 + $0x5c]]
        %v1383 = vstv %s1382
        %v1384 = vmul.f32 %v998, %v1383
        %v1385 = vadd.f32 %v1381, %v1384
        %1386 = vrot.lane.b32.xlu0 %v492, 46
        %v1387 = vpop.permute.xlu0 %1386
        %v1388 = vrot.slane %v1387, 7
        %vm1389 = vcmask 375808
        %v1390 = vsel %vm1389, %v1388, %v1387
        %v1392 = vmul.f32 %v1385, %v1390
        %1394 = vrot.lane.b32.xlu0 %v1392, 34
        %v1395 = vpop.permute.xlu0 %1394
        %v1396 = vrot.slane %v1395, 7
        %v1397 = vsel %vm1325, %v1396, %v1395
        %v1399 = vadd.f32 %v1314, %v1397
        %s1400 = sld [smem:[#allocation7 + $0x2c]]
        %v1401 = vstv %s1400
        %v1402 = vmul.f32 %v993, %v1401
        %s1403 = sld [smem:[#allocation7 + $0x5d]]
        %v1404 = vstv %s1403
        %v1405 = vmul.f32 %v998, %v1404
        %v1406 = vadd.f32 %v1402, %v1405
        %1407 = vrot.lane.b32.xlu0 %v511, 47
        %v1408 = vpop.permute.xlu0 %1407
        %v1409 = vrot.slane %v1408, 7
        %v1410 = vsel %vm1248, %v1409, %v1408
        %v1412 = vmul.f32 %v1406, %v1410
        %1414 = vrot.lane.b32.xlu0 %v1412, 30
        %v1415 = vpop.permute.xlu0 %1414
        %v1416 = vrot.slane %v1415, 7
        %v1417 = vsel %vm1240, %v1416, %v1415
        %v1419 = vadd.f32 %v1336, %v1417
        %s1420 = sld [smem:[#allocation7 + $0x2d]]
        %v1421 = vstv %s1420
        %v1422 = vmul.f32 %v993, %v1421
        %s1423 = sld [smem:[#allocation7 + $0x5e]]
        %v1424 = vstv %s1423
        %v1425 = vmul.f32 %v998, %v1424
        %v1426 = vadd.f32 %v1422, %v1425
        %1427 = vrot.lane.b32.xlu0 %v530, 48
        %v1428 = vpop.permute.xlu0 %1427
        %v1429 = vrot.slane %v1428, 7
        %vm1430 = vcmask 392192
        %v1431 = vsel %vm1430, %v1429, %v1428
        %v1433 = vmul.f32 %v1426, %v1431
        %1435 = vrot.lane.b32.xlu0 %v1433, 30
        %v1436 = vpop.permute.xlu0 %1435
        %v1437 = vrot.slane %v1436, 7
        %v1438 = vsel %vm1240, %v1437, %v1436
        %v1440 = vadd.f32 %v1357, %v1438
        %s1441 = sld [smem:[#allocation7 + $0x2e]]
        %v1442 = vstv %s1441
        %v1443 = vmul.f32 %v993, %v1442
        %s1444 = sld [smem:[#allocation7 + $0x5f]]
        %v1445 = vstv %s1444
        %v1446 = vmul.f32 %v998, %v1445
        %v1447 = vadd.f32 %v1443, %v1446
        %1448 = vrot.lane.b32.xlu0 %v549, 49
        %v1449 = vpop.permute.xlu0 %1448
        %v1450 = vrot.slane %v1449, 7
        %vm1451 = vcmask 400384
        %v1452 = vsel %vm1451, %v1450, %v1449
        %v1454 = vmul.f32 %v1447, %v1452
        %1456 = vrot.lane.b32.xlu0 %v1454, 30
        %v1457 = vpop.permute.xlu0 %1456
        %v1458 = vrot.slane %v1457, 7
        %v1459 = vsel %vm1240, %v1458, %v1457
        %v1461 = vadd.f32 %v1378, %v1459
        %s1462 = sld [smem:[#allocation7 + $0x2f]]
        %v1463 = vstv %s1462
        %v1464 = vmul.f32 %v993, %v1463
        %s1465 = sld [smem:[#allocation7 + $0x60]]
        %v1466 = vstv %s1465
        %v1467 = vmul.f32 %v998, %v1466
        %v1468 = vadd.f32 %v1464, %v1467
        %1469 = vrot.lane.b32.xlu0 %v575, 50
        %v1470 = vpop.permute.xlu0 %1469
        %v1471 = vrot.slane %v1470, 7
        %vm1472 = vcmask 408576
        %v1473 = vsel %vm1472, %v1471, %v1470
        %v1475 = vmul.f32 %v1468, %v1473
        %1477 = vrot.lane.b32.xlu0 %v1475, 30
        %v1478 = vpop.permute.xlu0 %1477
        %v1479 = vrot.slane %v1478, 7
        %v1480 = vsel %vm1240, %v1479, %v1478
        %v1482 = vadd.f32 %v1399, %v1480
        %s1483 = sld [smem:[#allocation7 + $0x30]]
        %v1484 = vstv %s1483
        %v1485 = vmul.f32 %v993, %v1484
        %s1486 = sld [smem:[#allocation7 + $0x61]]
        %v1487 = vstv %s1486
        %v1488 = vmul.f32 %v998, %v1487
        %v1489 = vadd.f32 %v1485, %v1488
        %1490 = vrot.lane.b32.xlu0 %v600, 51
        %v1491 = vpop.permute.xlu0 %1490
        %v1492 = vrot.slane %v1491, 7
        %v1493 = vsel %vm1226, %v1492, %v1491
        %v1495 = vmul.f32 %v1489, %v1493
        %1497 = vrot.lane.b32.xlu0 %v1495, 26
        %v1498 = vpop.permute.xlu0 %1497
        %v1499 = vrot.slane %v1498, 7
        %vm1500 = vcmask 211968
        %v1501 = vsel %vm1500, %v1499, %v1498
        %v1503 = vadd.f32 %v1419, %v1501
        %1505 = vrot.lane.b32.xlu0 %v1440, 127
        %v1506 = vpop.permute.xlu0 %1505
        %v1507 = vrot.slane %v1506, 1
        %v1508 = vsel %vm963, %v1506, %v1507
        %v1510 = vadd.f32 %v1503, %v1508
        %1512 = vrot.lane.b32.xlu0 %v1482, 127
        %v1513 = vpop.permute.xlu0 %1512
        %v1514 = vrot.slane %v1513, 1
        %v1515 = vsel %vm963, %v1513, %v1514
        %v1517 = vadd.f32 %v1461, %v1515
        %1519 = vrot.lane.b32.xlu0 %v1517, 126
        %v1520 = vpop.permute.xlu0 %1519
        %v1521 = vrot.slane %v1520, 1
        %v1522 = vsel %vm942, %v1520, %v1521
        %v1524 = vadd.f32 %v1510, %v1522
        %v1525 = vxor.u32 %v1524, 2147483648
        %v1526 = vmul.f32 %v1525, 1.442695
        %v1527 = vpow.pop %v1526
        %v1528 = vadd.f32 %v1527, 1.0
        %v1529 = vrcp.pop %v1528
        %v1530 = vmul.f32 %v1528, %v1529
        %v1531 = vsub.f32 1.0, %v1530
        %v1532 = vmul.f32 %v1529, %v1531
        %v1533 = vadd.f32 %v1529, %v1532
        %vm1534 = vweird.f32 %v1528
        %vm1535 = vweird.f32 %v1529
        %vm1536 = vmor %vm1534, %vm1535
        %v1537 = vsel %vm1536, %v1529, %v1533
        %v1538 = vand.u32 2147483647, %v1528
        %vm1539 = vcmp.eq.f32.partialorder %v1538, 8.507059e+37
        %v1540 = vand.u32 %v1528, 2147483648
        %v1541 = vor.u32 1.1754944e-38, %v1540
        %v1542 = vsel %vm1539, %v1541, %v1537
        %v1543 = vmul.f32 1.0, %v1542
        %v1545 = vperm.slane %v1543, 0
        %v1546 = vperm.slane %v1543, 1
        %v1547 = vperm.slane %v1543, 2
        %v1548 = vrot.slane %v1546, 4
        %v1549 = vsel %vm327, %v1545, %v1548
        %1550 = vrot.lane.b32.xlu0 %v1549, 51
        %v1551 = vpop.permute.xlu0 %1550
        %1552 = vrot.lane.b32.xlu0 %v1547, 51
        %v1553 = vpop.permute.xlu0 %1552
        %v1554 = vrot.slane %v1551, 4
        %v1555 = vrot.slane %v1553, 4
        %v1556 = vsel %vm327, %v1554, %v1555
        %v1557 = vsel %vm1226, %v1551, %v1556
        %v1559 = vmul.f32 %v392, %v1557
        %1560 = vst [vmem:[%s229] sm:$0xff] %v1559
        %s1561 = sand.u32 %s119, 1
        %s1562 = scalar_lea.sflag [#allocation5], %s1561
        %s1563 = sand.u32 %s119, 1
        %s1564 = smul.addr %s1563, 8
        %s1565 = scalar_lea.vmem [#allocation8], %s1564
        // Predicated region
        $region45: #{tpu_custom_call.1} parent=35 // pred_check
          %p1566 = pneg %p129
        $region46: #{tpu_custom_call.1} parent=35 // pred_check_branch
          %1568 = sbr.rel (%p1566) target = $region48
        $region47: #{tpu_custom_call.1} parent=35 // pred_region
          %1570 = vsyncadd %s1562, 0
          %s1571 = smul.addr %s22, 2
          %s1572 = smul.addr %s1571, 4
          %s1573 = scalar_lea.hbm %s4, %s1572
          %s1575 = sshll.u32 %s1565, 4
          %s1576 = int_to_ptr.vmem [resolvable:$true] %s1575
          %s1577 = sshll.u32 %s1573, 4
          %s1578 = int_to_ptr.hbm [resolvable:$true] %s1577
          %1580 = dma.vmem_to_hbm [thread:$0]  %s1576, 128, %s1578, %s1562
        $region48: #{tpu_custom_call.1} parent=35 // pred_fallthru
          _
      $region36: #{tpu_custom_call.1} parent=5 // pred_fallthru
        _
      %p1581 = scmp.le.s32.totalorder 2, %s17
      // Predicated region
      $region49: #{tpu_custom_call.1} parent=5 // pred_check
        %p1582 = pneg %p1581
      $region50: #{tpu_custom_call.1} parent=5 // pred_check_branch
        %1584 = sbr.rel (%p1582) target = $region52
      $region51: #{tpu_custom_call.1} parent=5 // pred_region
        %s1585 = ssub.s32 %s17, 2
        // Predicated region
        $region53: #{tpu_custom_call.1} parent=51 // pred_check
          %p1586 = pneg %p135
        $region54: #{tpu_custom_call.1} parent=51 // pred_check_branch
          %1588 = sbr.rel (%p1586) target = $region56
        $region55: #{tpu_custom_call.1} parent=51 // pred_region
          %s1589 = sand.u32 %s120, 1
          %s1590 = scalar_lea.sflag [#allocation5], %s1589
          %s1591 = sand.u32 %s120, 1
          %s1592 = smul.addr %s1591, 8
          %s1593 = scalar_lea.vmem [#allocation8], %s1592
          %1595 = dma.done %s1590, 128
        $region56: #{tpu_custom_call.1} parent=51 // pred_fallthru
          _
      $region52: #{tpu_custom_call.1} parent=5 // pred_fallthru
        _
    $region6: #{tpu_custom_call.1} parent=1 // loop_footer
      %s21 = sadd.s32 1, %s17
    $region7: #{tpu_custom_call.1} parent=1 // loop_footer_branch
      %16 = sbr.rel target = $region3
    $region8: #{tpu_custom_call.1} parent=1 // loop_exit
      _
    %1596 = vsyncpa [#allocation4], 1
    %s1597 = scalar_lea.sflag [#allocation4], 1
    %1598 = vsyncpa %s1597, 1
    %1599 = vsyncpa [#allocation5], 1
    %s1600 = scalar_lea.sflag [#allocation5], 1
    %1601 = vsyncpa %s1600, 1
    %1602 = vsyncpa [#allocation6], 1
    %s1603 = scalar_lea.sflag [#allocation6], 1
    %1604 = vsyncpa %s1603, 1

</llo_original>
